<compile_context>
chip_gen: v5e
topology: v5e:2x2
jax: 0.10.0
libtpu: 0.0.40
codegen_flags: <defaults>
</compile_context>

<pallas_src>
import numpy as np
import jax
import jax.numpy as jnp
from jax.experimental import pallas as pl
from jax.experimental.pallas import tpu as pltpu  # noqa: F401 (kept for scaled-up configs)

# ----------------------------- config (small, synthetic) -----------------------------
B, S, H = 2, 8, 32           # batch, seq, hidden
NH, DH = 4, 8                # heads, head dim (NH*DH == H)
FFN = 64                     # intermediate size
L = 2                        # num hidden layers
VOCAB, TYPE_VOCAB, MAX_POS = 64, 2, 16
N_CLASS = 3                  # task_def.n_class for the (classification) task head
N_PAD = 128                  # lane-dense padded logits width (sliced back to N_CLASS)
BS = B * S                   # flattened row count
LN_EPS = 1e-12
SCALE = float(1.0 / np.sqrt(DH))

# rows of the packed (NVEC, N_PAD) f32 "small vectors" block
VEC_EMB_G, VEC_EMB_B, VEC_POOL_B, VEC_CLS_B = 0, 1, 2, 3
VEC_LAYER0 = 4
VEC_PER_LAYER = 8            # bqkv | bo | g1 | be1 | bi | b2 | g2 | be2
NVEC = VEC_LAYER0 + L * VEC_PER_LAYER


# ----------------------------- shared math helpers -----------------------------
def _layernorm(x, gamma, beta, eps=LN_EPS):
    mean = jnp.mean(x, axis=-1, keepdims=True)
    var = jnp.mean((x - mean) ** 2, axis=-1, keepdims=True)
    return (x - mean) * jax.lax.rsqrt(var + eps) * gamma + beta


def _gelu(x):
    # "gelu_new" (tanh) activation; tanh runs on the EUP.
    c = float(np.sqrt(2.0 / np.pi))
    return 0.5 * x * (1.0 + jnp.tanh(c * (x + 0.044715 * x * x * x)))


def _mm(a, b):
    return jax.lax.dot_general(a, b, (((1,), (0,)), ((), ())),
                               preferred_element_type=jnp.float32)


# ----------------------------- the fused Pallas kernel -----------------------------
def fused_bert_kernel(emb_ref, mask_ref, vec_ref,
                      wqkv_ref, wo_ref, wi_ref, w2_ref, pw_ref, cw_ref,
                      o_ref):
    """Single invocation: embed-LN + L unrolled BertLayers + pooler + scoring head."""
    V = vec_ref[...]                              # (NVEC, 128) f32, all small vectors
    emb_g = V[VEC_EMB_G:VEC_EMB_G + 1, :H]
    emb_b = V[VEC_EMB_B:VEC_EMB_B + 1, :H]
    pool_b = V[VEC_POOL_B:VEC_POOL_B + 1, :H]
    cls_b = V[VEC_CLS_B:VEC_CLS_B + 1, :]         # (1, N_PAD)

    mask = mask_ref[...]                          # (BS, BS) additive bias
    x = _layernorm(emb_ref[...], emb_g, emb_b)    # (BS, H) f32

    for l in range(L):
        base = VEC_LAYER0 + l * VEC_PER_LAYER
        bqkv = V[base + 0:base + 1, :3 * H]
        bo = V[base + 1:base + 2, :H]
        g1 = V[base + 2:base + 3, :H]
        be1 = V[base + 3:base + 4, :H]
        bi = V[base + 4:base + 5, :FFN]
        b2 = V[base + 5:base + 6, :H]
        g2 = V[base + 6:base + 7, :H]
        be2 = V[base + 7:base + 8, :H]

        wqkv = wqkv_ref[l]                        # (H, 3H)  bf16
        wo = wo_ref[l]                            # (H, H)   bf16
        wi = wi_ref[l]                            # (H, FFN) bf16
        w2 = w2_ref[l]                            # (FFN, H) bf16

        # --- fused QKV projection: one flat matmul, 96 live lanes ---
        qkv = _mm(x.astype(jnp.bfloat16), wqkv) + bqkv          # (BS, 3H) f32

        def heads(off, _qkv=qkv):                 # head split via static lane slices
            return jnp.stack([_qkv[:, off + h * DH: off + (h + 1) * DH]
                              for h in range(NH)], axis=0)      # (NH, BS, DH)

        q = heads(0).astype(jnp.bfloat16)
        k = heads(H).astype(jnp.bfloat16)
        v = heads(2 * H).astype(jnp.bfloat16)

        # --- head-batched attention over the flattened batch (block-diag masked) ---
        scores = jnp.einsum('hqd,hkd->hqk', q, k,
                            preferred_element_type=jnp.float32) * SCALE
        scores = scores + mask[None, :, :]
        scores = scores - jnp.max(scores, axis=-1, keepdims=True)
        e = jnp.exp(scores)
        p = e * pl.reciprocal(jnp.sum(e, axis=-1, keepdims=True), approx=True)
        ctx = jnp.einsum('hqk,hkd->hqd', p.astype(jnp.bfloat16), v,
                         preferred_element_type=jnp.float32)    # (NH, BS, DH)

        # --- merge heads to lane-major (BS, H); one flat output projection ---
        ctx_flat = jnp.concatenate([ctx[h] for h in range(NH)], axis=-1)  # (BS, H)
        attn = _mm(ctx_flat.astype(jnp.bfloat16), wo) + bo
        h1 = _layernorm(attn + x, g1, be1)

        # --- FFN ---
        inter = _gelu(_mm(h1.astype(jnp.bfloat16), wi) + bi)
        ffn = _mm(inter.astype(jnp.bfloat16), w2) + b2
        x = _layernorm(ffn + h1, g2, be2)

    # --- epilogue: pooler (tanh Linear) + scoring head over ALL BS rows so the store
    #     is a full-sublane, lane-dense (BS, 128) vst; wrapper slices CLS rows. ---
    pooled = jnp.tanh(_mm(x.astype(jnp.bfloat16), pw_ref[...]) + pool_b)
    o_ref[...] = _mm(pooled.astype(jnp.bfloat16), cw_ref[...]) + cls_b


# ----------------------------- pallas_call wrapper -----------------------------
def _pad_row(v):
    v = jnp.asarray(v, jnp.float32).reshape(1, -1)
    return jnp.zeros((1, N_PAD), jnp.float32).at[:, :v.shape[1]].set(v)


def san_bert_forward(params, input_ids, token_type_ids, attention_mask):
    # TODO(synk): token-id / position / type embedding gathers stay in JAX glue
    # (vocab gather has no clean rectangular-DMA equivalent at this size).
    positions = jnp.arange(S)
    emb = (params['word_emb'][input_ids]
           + params['pos_emb'][positions][None, :, :]
           + params['type_emb'][token_type_ids]).reshape(BS, H).astype(jnp.float32)

    # additive attention bias, flattened batch with block-diagonal cross-batch masking
    key_bias = ((1.0 - attention_mask.astype(jnp.float32)) * -10000.0).reshape(BS)
    batch_ids = jnp.repeat(jnp.arange(B), S)
    same_batch = batch_ids[:, None] == batch_ids[None, :]
    mask2d = jnp.where(same_batch, key_bias[None, :], jnp.float32(-10000.0))   # (BS, BS)

    layers = params['layers']

    # --- pack ALL tiny vectors (biases / LN params / classifier bias) into one block ---
    rows = [_pad_row(params['emb_g']), _pad_row(params['emb_b']),
            _pad_row(params['pool_b']), _pad_row(params['cls_b'])]
    for p in layers:
        bqkv = jnp.concatenate([p['bq'], p['bk'], p['bv']], axis=1)           # (1, 3H)
        rows += [_pad_row(bqkv), _pad_row(p['bo']), _pad_row(p['g1']), _pad_row(p['be1']),
                 _pad_row(p['bi']), _pad_row(p['b2']), _pad_row(p['g2']), _pad_row(p['be2'])]
    vecs = jnp.concatenate(rows, axis=0)                                       # (NVEC, 128)

    # --- bf16 matmul weights (f32 accumulation inside the kernel), stacked over layers ---
    wqkv_all = jnp.stack([jnp.concatenate([p['wq'], p['wk'], p['wv']], axis=1)
                          for p in layers]).astype(jnp.bfloat16)               # (L, H, 3H)
    wo_all = jnp.stack([p['wo'] for p in layers]).astype(jnp.bfloat16)         # (L, H, H)
    wi_all = jnp.stack([p['wi'] for p in layers]).astype(jnp.bfloat16)         # (L, H, FFN)
    w2_all = jnp.stack([p['w2'] for p in layers]).astype(jnp.bfloat16)         # (L, FFN, H)
    pool_w = params['pool_w'].astype(jnp.bfloat16)                             # (H, H)
    cls_w_pad = jnp.zeros((H, N_PAD), jnp.float32).at[:, :N_CLASS].set(
        params['cls_w']).astype(jnp.bfloat16)                                  # (H, N_PAD)

    # No grid: whole (tiny) working set lives in VMEM for a single kernel invocation.
    logits_pad = pl.pallas_call(
        fused_bert_kernel,
        out_shape=jax.ShapeDtypeStruct((BS, N_PAD), jnp.float32),
    )(emb, mask2d, vecs, wqkv_all, wo_all, wi_all, w2_all, pool_w, cls_w_pad)

    # slice CLS rows (row 0 of each sequence) and the first N_CLASS lanes
    return logits_pad.reshape(B, S, N_PAD)[:, 0, :N_CLASS]


# ----------------------------- pure-JAX reference (for validation) -----------------------------
def ref_forward(params, input_ids, token_type_ids, attention_mask):
    positions = jnp.arange(S)
    x = (params['word_emb'][input_ids]
         + params['pos_emb'][positions][None, :, :]
         + params['type_emb'][token_type_ids])
    x = _layernorm(x, params['emb_g'], params['emb_b'])
    mask4 = ((1.0 - attention_mask.astype(jnp.float32)) * -10000.0)[:, None, None, :]
    for p in params['layers']:
        q = (x @ p['wq'] + p['bq']).reshape(B, S, NH, DH)
        k = (x @ p['wk'] + p['bk']).reshape(B, S, NH, DH)
        v = (x @ p['wv'] + p['bv']).reshape(B, S, NH, DH)
        scores = jnp.einsum('bqhd,bkhd->bhqk', q, k) * SCALE + mask4
        probs = jax.nn.softmax(scores, axis=-1)
        ctx = jnp.einsum('bhqk,bkhd->bqhd', probs, v).reshape(B, S, H)
        attn = ctx @ p['wo'] + p['bo']
        h1 = _layernorm(attn + x, p['g1'], p['be1'])
        inter = _gelu(h1 @ p['wi'] + p['bi'])
        ffn = inter @ p['w2'] + p['b2']
        x = _layernorm(ffn + h1, p['g2'], p['be2'])
    pooled = jnp.tanh(x[:, 0, :] @ params['pool_w'] + params['pool_b'])
    return pooled @ params['cls_w'] + params['cls_b']


# ----------------------------- deterministic synthetic parameters -----------------------------
def init_params(key):
    keys = jax.random.split(key, 64)
    it = iter(keys)

    def nrm(shape, scale=0.02):
        return (scale * jax.random.normal(next(it), shape)).astype(jnp.float32)

    params = dict(
        word_emb=nrm((VOCAB, H)),
        pos_emb=nrm((MAX_POS, H)),
        type_emb=nrm((TYPE_VOCAB, H)),
        emb_g=jnp.ones((1, H), jnp.float32),
        emb_b=jnp.zeros((1, H), jnp.float32),
        pool_w=nrm((H, H)), pool_b=nrm((1, H)),
        cls_w=nrm((H, N_CLASS)), cls_b=nrm((1, N_CLASS)),
        layers=[],
    )
    for _ in range(L):
        params['layers'].append(dict(
            wq=nrm((H, H)), bq=nrm((1, H)),
            wk=nrm((H, H)), bk=nrm((1, H)),
            wv=nrm((H, H)), bv=nrm((1, H)),
            wo=nrm((H, H)), bo=nrm((1, H)),
            g1=jnp.ones((1, H), jnp.float32), be1=jnp.zeros((1, H), jnp.float32),
            wi=nrm((H, FFN)), bi=nrm((1, FFN)),
            w2=nrm((FFN, H)), b2=nrm((1, H)),
            g2=jnp.ones((1, H), jnp.float32), be2=jnp.zeros((1, H), jnp.float32),
        ))
    return params


if __name__ == "__main__":
    key = jax.random.PRNGKey(0)
    pkey, ikey = jax.random.split(key)
    params = init_params(pkey)

    input_ids = jax.random.randint(ikey, (B, S), 0, VOCAB, dtype=jnp.int32)
    token_type_ids = jnp.zeros((B, S), jnp.int32)
    attention_mask = jnp.array([[1] * S, [1] * 6 + [0] * 2], dtype=jnp.int32)

    logits = jax.jit(san_bert_forward)(params, input_ids, token_type_ids, attention_mask)
    logits = jax.block_until_ready(logits)

    ref = ref_forward(params, input_ids, token_type_ids, attention_mask)
    assert logits.shape == (B, N_CLASS)
    np.testing.assert_allclose(np.asarray(logits), np.asarray(ref), atol=1e-2, rtol=1e-2)
    print("KERNEL_OK")
</pallas_src>

<mosaic_0001>
module attributes {stable_mosaic.version = 11 : i64} {
  func.func @fused_bert_kernel(%arg0: memref<16x32xf32, #tpu.memory_space<vmem>>, %arg1: memref<16x16xf32, #tpu.memory_space<vmem>>, %arg2: memref<20x128xf32, #tpu.memory_space<vmem>>, %arg3: memref<2x32x96xbf16, #tpu.memory_space<vmem>>, %arg4: memref<2x32x32xbf16, #tpu.memory_space<vmem>>, %arg5: memref<2x32x64xbf16, #tpu.memory_space<vmem>>, %arg6: memref<2x64x32xbf16, #tpu.memory_space<vmem>>, %arg7: memref<32x32xbf16, #tpu.memory_space<vmem>>, %arg8: memref<32x128xbf16, #tpu.memory_space<vmem>>, %arg9: memref<16x128xf32, #tpu.memory_space<vmem>>) attributes {dimension_semantics = [], scalar_prefetch = 0 : i64, scratch_operands = 0 : i64, tpu.core_type = #tpu.core_type<tc>} {
    %c0 = arith.constant 0 : index
    %c0_0 = arith.constant 0 : index
    %0 = vector.load %arg2[%c0, %c0_0] : memref<20x128xf32, #tpu.memory_space<vmem>>, vector<20x128xf32>
    %1 = vector.extract_strided_slice %0 {offsets = [0, 0], sizes = [1, 32], strides = [1, 1]} : vector<20x128xf32> to vector<1x32xf32>
    %2 = vector.extract_strided_slice %0 {offsets = [1, 0], sizes = [1, 32], strides = [1, 1]} : vector<20x128xf32> to vector<1x32xf32>
    %3 = vector.extract_strided_slice %0 {offsets = [2, 0], sizes = [1, 32], strides = [1, 1]} : vector<20x128xf32> to vector<1x32xf32>
    %4 = vector.extract_strided_slice %0 {offsets = [3, 0], sizes = [1, 128], strides = [1, 1]} : vector<20x128xf32> to vector<1x128xf32>
    %c0_1 = arith.constant 0 : index
    %c0_2 = arith.constant 0 : index
    %5 = vector.load %arg1[%c0_1, %c0_2] : memref<16x16xf32, #tpu.memory_space<vmem>>, vector<16x16xf32>
    %c0_3 = arith.constant 0 : index
    %c0_4 = arith.constant 0 : index
    %6 = vector.load %arg0[%c0_3, %c0_4] : memref<16x32xf32, #tpu.memory_space<vmem>>, vector<16x32xf32>
    %cst = arith.constant dense<0.000000e+00> : vector<16xf32>
    %7 = vector.multi_reduction <add>, %6, %cst [1] : vector<16x32xf32> to vector<16xf32>
    %8 = vector.shape_cast %7 : vector<16xf32> to vector<16x1xf32>
    %cst_5 = arith.constant 3.200000e+01 : f32
    %9 = vector.broadcast %cst_5 : f32 to vector<16x1xf32>
    %10 = arith.divf %8, %9 : vector<16x1xf32>
    %11 = vector.broadcast %10 : vector<16x1xf32> to vector<16x32xf32>
    %12 = arith.subf %6, %11 : vector<16x32xf32>
    %13 = arith.mulf %12, %12 : vector<16x32xf32>
    %cst_6 = arith.constant dense<0.000000e+00> : vector<16xf32>
    %14 = vector.multi_reduction <add>, %13, %cst_6 [1] : vector<16x32xf32> to vector<16xf32>
    %15 = vector.shape_cast %14 : vector<16xf32> to vector<16x1xf32>
    %cst_7 = arith.constant 3.200000e+01 : f32
    %16 = vector.broadcast %cst_7 : f32 to vector<16x1xf32>
    %17 = arith.divf %15, %16 : vector<16x1xf32>
    %18 = vector.broadcast %10 : vector<16x1xf32> to vector<16x32xf32>
    %19 = arith.subf %6, %18 : vector<16x32xf32>
    %cst_8 = arith.constant 9.99999996E-13 : f32
    %20 = vector.broadcast %cst_8 : f32 to vector<16x1xf32>
    %21 = arith.addf %17, %20 : vector<16x1xf32>
    %22 = math.rsqrt %21 : vector<16x1xf32>
    %23 = vector.broadcast %22 : vector<16x1xf32> to vector<16x32xf32>
    %24 = arith.mulf %19, %23 : vector<16x32xf32>
    %25 = vector.broadcast %1 : vector<1x32xf32> to vector<16x32xf32>
    %26 = arith.mulf %24, %25 : vector<16x32xf32>
    %27 = vector.broadcast %2 : vector<1x32xf32> to vector<16x32xf32>
    %28 = arith.addf %26, %27 : vector<16x32xf32>
    %29 = vector.extract_strided_slice %0 {offsets = [4, 0], sizes = [1, 96], strides = [1, 1]} : vector<20x128xf32> to vector<1x96xf32>
    %30 = vector.extract_strided_slice %0 {offsets = [5, 0], sizes = [1, 32], strides = [1, 1]} : vector<20x128xf32> to vector<1x32xf32>
    %31 = vector.extract_strided_slice %0 {offsets = [6, 0], sizes = [1, 32], strides = [1, 1]} : vector<20x128xf32> to vector<1x32xf32>
    %32 = vector.extract_strided_slice %0 {offsets = [7, 0], sizes = [1, 32], strides = [1, 1]} : vector<20x128xf32> to vector<1x32xf32>
    %33 = vector.extract_strided_slice %0 {offsets = [8, 0], sizes = [1, 64], strides = [1, 1]} : vector<20x128xf32> to vector<1x64xf32>
    %34 = vector.extract_strided_slice %0 {offsets = [9, 0], sizes = [1, 32], strides = [1, 1]} : vector<20x128xf32> to vector<1x32xf32>
    %35 = vector.extract_strided_slice %0 {offsets = [10, 0], sizes = [1, 32], strides = [1, 1]} : vector<20x128xf32> to vector<1x32xf32>
    %36 = vector.extract_strided_slice %0 {offsets = [11, 0], sizes = [1, 32], strides = [1, 1]} : vector<20x128xf32> to vector<1x32xf32>
    %c0_9 = arith.constant 0 : index
    %c0_10 = arith.constant 0 : index
    %c0_11 = arith.constant 0 : index
    %37 = vector.load %arg3[%c0_9, %c0_10, %c0_11] : memref<2x32x96xbf16, #tpu.memory_space<vmem>>, vector<1x32x96xbf16>
    %38 = vector.shape_cast %37 : vector<1x32x96xbf16> to vector<32x96xbf16>
    %c0_12 = arith.constant 0 : index
    %c0_13 = arith.constant 0 : index
    %c0_14 = arith.constant 0 : index
    %39 = vector.load %arg4[%c0_12, %c0_13, %c0_14] : memref<2x32x32xbf16, #tpu.memory_space<vmem>>, vector<1x32x32xbf16>
    %40 = vector.shape_cast %39 : vector<1x32x32xbf16> to vector<32x32xbf16>
    %c0_15 = arith.constant 0 : index
    %c0_16 = arith.constant 0 : index
    %c0_17 = arith.constant 0 : index
    %41 = vector.load %arg5[%c0_15, %c0_16, %c0_17] : memref<2x32x64xbf16, #tpu.memory_space<vmem>>, vector<1x32x64xbf16>
    %42 = vector.shape_cast %41 : vector<1x32x64xbf16> to vector<32x64xbf16>
    %c0_18 = arith.constant 0 : index
    %c0_19 = arith.constant 0 : index
    %c0_20 = arith.constant 0 : index
    %43 = vector.load %arg6[%c0_18, %c0_19, %c0_20] : memref<2x64x32xbf16, #tpu.memory_space<vmem>>, vector<1x64x32xbf16>
    %44 = vector.shape_cast %43 : vector<1x64x32xbf16> to vector<64x32xbf16>
    %45 = arith.truncf %28 : vector<16x32xf32> to vector<16x32xbf16>
    %cst_21 = arith.constant dense<0.000000e+00> : vector<16x96xf32>
    %46 = tpu.matmul %45, %38, %cst_21 {dimension_numbers = #tpu.dot_dimension_numbers<[1], [0], [0], [1], [0, 0, 1, 1], [], []>} : vector<16x32xbf16>, vector<32x96xbf16>, vector<16x96xf32> -> vector<16x96xf32>
    %47 = vector.broadcast %29 : vector<1x96xf32> to vector<16x96xf32>
    %48 = arith.addf %46, %47 : vector<16x96xf32>
    %49 = vector.extract_strided_slice %48 {offsets = [0, 0], sizes = [16, 8], strides = [1, 1]} : vector<16x96xf32> to vector<16x8xf32>
    %50 = vector.extract_strided_slice %48 {offsets = [0, 8], sizes = [16, 8], strides = [1, 1]} : vector<16x96xf32> to vector<16x8xf32>
    %51 = vector.extract_strided_slice %48 {offsets = [0, 16], sizes = [16, 8], strides = [1, 1]} : vector<16x96xf32> to vector<16x8xf32>
    %52 = vector.extract_strided_slice %48 {offsets = [0, 24], sizes = [16, 8], strides = [1, 1]} : vector<16x96xf32> to vector<16x8xf32>
    %53 = vector.shape_cast %49 : vector<16x8xf32> to vector<1x16x8xf32>
    %54 = vector.shape_cast %50 : vector<16x8xf32> to vector<1x16x8xf32>
    %55 = vector.shape_cast %51 : vector<16x8xf32> to vector<1x16x8xf32>
    %56 = vector.shape_cast %52 : vector<16x8xf32> to vector<1x16x8xf32>
    %57 = tpu.concatenate %53, %54, %55, %56 in 0 : vector<1x16x8xf32>, vector<1x16x8xf32>, vector<1x16x8xf32>, vector<1x16x8xf32> -> vector<4x16x8xf32>
    %58 = arith.truncf %57 : vector<4x16x8xf32> to vector<4x16x8xbf16>
    %59 = vector.extract_strided_slice %48 {offsets = [0, 32], sizes = [16, 8], strides = [1, 1]} : vector<16x96xf32> to vector<16x8xf32>
    %60 = vector.extract_strided_slice %48 {offsets = [0, 40], sizes = [16, 8], strides = [1, 1]} : vector<16x96xf32> to vector<16x8xf32>
    %61 = vector.extract_strided_slice %48 {offsets = [0, 48], sizes = [16, 8], strides = [1, 1]} : vector<16x96xf32> to vector<16x8xf32>
    %62 = vector.extract_strided_slice %48 {offsets = [0, 56], sizes = [16, 8], strides = [1, 1]} : vector<16x96xf32> to vector<16x8xf32>
    %63 = vector.shape_cast %59 : vector<16x8xf32> to vector<1x16x8xf32>
    %64 = vector.shape_cast %60 : vector<16x8xf32> to vector<1x16x8xf32>
    %65 = vector.shape_cast %61 : vector<16x8xf32> to vector<1x16x8xf32>
    %66 = vector.shape_cast %62 : vector<16x8xf32> to vector<1x16x8xf32>
    %67 = tpu.concatenate %63, %64, %65, %66 in 0 : vector<1x16x8xf32>, vector<1x16x8xf32>, vector<1x16x8xf32>, vector<1x16x8xf32> -> vector<4x16x8xf32>
    %68 = arith.truncf %67 : vector<4x16x8xf32> to vector<4x16x8xbf16>
    %69 = vector.extract_strided_slice %48 {offsets = [0, 64], sizes = [16, 8], strides = [1, 1]} : vector<16x96xf32> to vector<16x8xf32>
    %70 = vector.extract_strided_slice %48 {offsets = [0, 72], sizes = [16, 8], strides = [1, 1]} : vector<16x96xf32> to vector<16x8xf32>
    %71 = vector.extract_strided_slice %48 {offsets = [0, 80], sizes = [16, 8], strides = [1, 1]} : vector<16x96xf32> to vector<16x8xf32>
    %72 = vector.extract_strided_slice %48 {offsets = [0, 88], sizes = [16, 8], strides = [1, 1]} : vector<16x96xf32> to vector<16x8xf32>
    %73 = vector.shape_cast %69 : vector<16x8xf32> to vector<1x16x8xf32>
    %74 = vector.shape_cast %70 : vector<16x8xf32> to vector<1x16x8xf32>
    %75 = vector.shape_cast %71 : vector<16x8xf32> to vector<1x16x8xf32>
    %76 = vector.shape_cast %72 : vector<16x8xf32> to vector<1x16x8xf32>
    %77 = tpu.concatenate %73, %74, %75, %76 in 0 : vector<1x16x8xf32>, vector<1x16x8xf32>, vector<1x16x8xf32>, vector<1x16x8xf32> -> vector<4x16x8xf32>
    %78 = arith.truncf %77 : vector<4x16x8xf32> to vector<4x16x8xbf16>
    "tpu.trace_start"() <{level = 10 : i32, message = "hqd,hkd->hqk"}> : () -> ()
    %cst_22 = arith.constant dense<0.000000e+00> : vector<4x16x16xf32>
    %79 = tpu.matmul %58, %68, %cst_22 {dimension_numbers = #tpu.dot_dimension_numbers<[2], [2], [1], [1], [0, 0, 0, 1, 1, 1], [0], [0]>} : vector<4x16x8xbf16>, vector<4x16x8xbf16>, vector<4x16x16xf32> -> vector<4x16x16xf32>
    "tpu.trace_stop"() : () -> ()
    %cst_23 = arith.constant 0.353553385 : f32
    %80 = vector.broadcast %cst_23 : f32 to vector<4x16x16xf32>
    %81 = arith.mulf %79, %80 : vector<4x16x16xf32>
    %82 = vector.shape_cast %5 : vector<16x16xf32> to vector<1x16x16xf32>
    %83 = vector.broadcast %82 : vector<1x16x16xf32> to vector<4x16x16xf32>
    %84 = arith.addf %81, %83 : vector<4x16x16xf32>
    %cst_24 = arith.constant dense<0xFF800000> : vector<4x16xf32>
    %85 = vector.multi_reduction <maximumf>, %84, %cst_24 [2] : vector<4x16x16xf32> to vector<4x16xf32>
    %86 = vector.shape_cast %85 : vector<4x16xf32> to vector<4x16x1xf32>
    %87 = vector.broadcast %86 : vector<4x16x1xf32> to vector<4x16x16xf32>
    %88 = arith.subf %84, %87 : vector<4x16x16xf32>
    %89 = math.exp %88 : vector<4x16x16xf32>
    %cst_25 = arith.constant dense<0.000000e+00> : vector<4x16xf32>
    %90 = vector.multi_reduction <add>, %89, %cst_25 [2] : vector<4x16x16xf32> to vector<4x16xf32>
    %91 = vector.shape_cast %90 : vector<4x16xf32> to vector<4x16x1xf32>
    %92 = tpu.reciprocal %91 {approx = true} : vector<4x16x1xf32> -> vector<4x16x1xf32>
    %93 = vector.broadcast %92 : vector<4x16x1xf32> to vector<4x16x16xf32>
    %94 = arith.mulf %89, %93 : vector<4x16x16xf32>
    %95 = arith.truncf %94 : vector<4x16x16xf32> to vector<4x16x16xbf16>
    "tpu.trace_start"() <{level = 10 : i32, message = "hqk,hkd->hqd"}> : () -> ()
    %cst_26 = arith.constant dense<0.000000e+00> : vector<4x16x8xf32>
    %96 = tpu.matmul %95, %78, %cst_26 {dimension_numbers = #tpu.dot_dimension_numbers<[2], [1], [1], [2], [0, 0, 0, 1, 1, 2], [0], [0]>} : vector<4x16x16xbf16>, vector<4x16x8xbf16>, vector<4x16x8xf32> -> vector<4x16x8xf32>
    "tpu.trace_stop"() : () -> ()
    %97 = vector.extract_strided_slice %96 {offsets = [0, 0, 0], sizes = [1, 16, 8], strides = [1, 1, 1]} : vector<4x16x8xf32> to vector<1x16x8xf32>
    %98 = vector.shape_cast %97 : vector<1x16x8xf32> to vector<16x8xf32>
    %99 = vector.extract_strided_slice %96 {offsets = [1, 0, 0], sizes = [1, 16, 8], strides = [1, 1, 1]} : vector<4x16x8xf32> to vector<1x16x8xf32>
    %100 = vector.shape_cast %99 : vector<1x16x8xf32> to vector<16x8xf32>
    %101 = vector.extract_strided_slice %96 {offsets = [2, 0, 0], sizes = [1, 16, 8], strides = [1, 1, 1]} : vector<4x16x8xf32> to vector<1x16x8xf32>
    %102 = vector.shape_cast %101 : vector<1x16x8xf32> to vector<16x8xf32>
    %103 = vector.extract_strided_slice %96 {offsets = [3, 0, 0], sizes = [1, 16, 8], strides = [1, 1, 1]} : vector<4x16x8xf32> to vector<1x16x8xf32>
    %104 = vector.shape_cast %103 : vector<1x16x8xf32> to vector<16x8xf32>
    %105 = tpu.concatenate %98, %100, %102, %104 in 1 : vector<16x8xf32>, vector<16x8xf32>, vector<16x8xf32>, vector<16x8xf32> -> vector<16x32xf32>
    %106 = arith.truncf %105 : vector<16x32xf32> to vector<16x32xbf16>
    %cst_27 = arith.constant dense<0.000000e+00> : vector<16x32xf32>
    %107 = tpu.matmul %106, %40, %cst_27 {dimension_numbers = #tpu.dot_dimension_numbers<[1], [0], [0], [1], [0, 0, 1, 1], [], []>} : vector<16x32xbf16>, vector<32x32xbf16>, vector<16x32xf32> -> vector<16x32xf32>
    %108 = vector.broadcast %30 : vector<1x32xf32> to vector<16x32xf32>
    %109 = arith.addf %107, %108 : vector<16x32xf32>
    %110 = arith.addf %109, %28 : vector<16x32xf32>
    %cst_28 = arith.constant dense<0.000000e+00> : vector<16xf32>
    %111 = vector.multi_reduction <add>, %110, %cst_28 [1] : vector<16x32xf32> to vector<16xf32>
    %112 = vector.shape_cast %111 : vector<16xf32> to vector<16x1xf32>
    %cst_29 = arith.constant 3.200000e+01 : f32
    %113 = vector.broadcast %cst_29 : f32 to vector<16x1xf32>
    %114 = arith.divf %112, %113 : vector<16x1xf32>
    %115 = vector.broadcast %114 : vector<16x1xf32> to vector<16x32xf32>
    %116 = arith.subf %110, %115 : vector<16x32xf32>
    %117 = arith.mulf %116, %116 : vector<16x32xf32>
    %cst_30 = arith.constant dense<0.000000e+00> : vector<16xf32>
    %118 = vector.multi_reduction <add>, %117, %cst_30 [1] : vector<16x32xf32> to vector<16xf32>
    %119 = vector.shape_cast %118 : vector<16xf32> to vector<16x1xf32>
    %cst_31 = arith.constant 3.200000e+01 : f32
    %120 = vector.broadcast %cst_31 : f32 to vector<16x1xf32>
    %121 = arith.divf %119, %120 : vector<16x1xf32>
    %122 = vector.broadcast %114 : vector<16x1xf32> to vector<16x32xf32>
    %123 = arith.subf %110, %122 : vector<16x32xf32>
    %cst_32 = arith.constant 9.99999996E-13 : f32
    %124 = vector.broadcast %cst_32 : f32 to vector<16x1xf32>
    %125 = arith.addf %121, %124 : vector<16x1xf32>
    %126 = math.rsqrt %125 : vector<16x1xf32>
    %127 = vector.broadcast %126 : vector<16x1xf32> to vector<16x32xf32>
    %128 = arith.mulf %123, %127 : vector<16x32xf32>
    %129 = vector.broadcast %31 : vector<1x32xf32> to vector<16x32xf32>
    %130 = arith.mulf %128, %129 : vector<16x32xf32>
    %131 = vector.broadcast %32 : vector<1x32xf32> to vector<16x32xf32>
    %132 = arith.addf %130, %131 : vector<16x32xf32>
    %133 = arith.truncf %132 : vector<16x32xf32> to vector<16x32xbf16>
    %cst_33 = arith.constant dense<0.000000e+00> : vector<16x64xf32>
    %134 = tpu.matmul %133, %42, %cst_33 {dimension_numbers = #tpu.dot_dimension_numbers<[1], [0], [0], [1], [0, 0, 1, 1], [], []>} : vector<16x32xbf16>, vector<32x64xbf16>, vector<16x64xf32> -> vector<16x64xf32>
    %135 = vector.broadcast %33 : vector<1x64xf32> to vector<16x64xf32>
    %136 = arith.addf %134, %135 : vector<16x64xf32>
    %cst_34 = arith.constant 5.000000e-01 : f32
    %137 = vector.broadcast %cst_34 : f32 to vector<16x64xf32>
    %138 = arith.mulf %137, %136 : vector<16x64xf32>
    %cst_35 = arith.constant 4.471500e-02 : f32
    %139 = vector.broadcast %cst_35 : f32 to vector<16x64xf32>
    %140 = arith.mulf %139, %136 : vector<16x64xf32>
    %141 = arith.mulf %140, %136 : vector<16x64xf32>
    %142 = arith.mulf %141, %136 : vector<16x64xf32>
    %143 = arith.addf %136, %142 : vector<16x64xf32>
    %cst_36 = arith.constant 0.797884583 : f32
    %144 = vector.broadcast %cst_36 : f32 to vector<16x64xf32>
    %145 = arith.mulf %144, %143 : vector<16x64xf32>
    %146 = math.tanh %145 : vector<16x64xf32>
    %cst_37 = arith.constant 1.000000e+00 : f32
    %147 = vector.broadcast %cst_37 : f32 to vector<16x64xf32>
    %148 = arith.addf %147, %146 : vector<16x64xf32>
    %149 = arith.mulf %138, %148 : vector<16x64xf32>
    %150 = arith.truncf %149 : vector<16x64xf32> to vector<16x64xbf16>
    %cst_38 = arith.constant dense<0.000000e+00> : vector<16x32xf32>
    %151 = tpu.matmul %150, %44, %cst_38 {dimension_numbers = #tpu.dot_dimension_numbers<[1], [0], [0], [1], [0, 0, 1, 1], [], []>} : vector<16x64xbf16>, vector<64x32xbf16>, vector<16x32xf32> -> vector<16x32xf32>
    %152 = vector.broadcast %34 : vector<1x32xf32> to vector<16x32xf32>
    %153 = arith.addf %151, %152 : vector<16x32xf32>
    %154 = arith.addf %153, %132 : vector<16x32xf32>
    %cst_39 = arith.constant dense<0.000000e+00> : vector<16xf32>
    %155 = vector.multi_reduction <add>, %154, %cst_39 [1] : vector<16x32xf32> to vector<16xf32>
    %156 = vector.shape_cast %155 : vector<16xf32> to vector<16x1xf32>
    %cst_40 = arith.constant 3.200000e+01 : f32
    %157 = vector.broadcast %cst_40 : f32 to vector<16x1xf32>
    %158 = arith.divf %156, %157 : vector<16x1xf32>
    %159 = vector.broadcast %158 : vector<16x1xf32> to vector<16x32xf32>
    %160 = arith.subf %154, %159 : vector<16x32xf32>
    %161 = arith.mulf %160, %160 : vector<16x32xf32>
    %cst_41 = arith.constant dense<0.000000e+00> : vector<16xf32>
    %162 = vector.multi_reduction <add>, %161, %cst_41 [1] : vector<16x32xf32> to vector<16xf32>
    %163 = vector.shape_cast %162 : vector<16xf32> to vector<16x1xf32>
    %cst_42 = arith.constant 3.200000e+01 : f32
    %164 = vector.broadcast %cst_42 : f32 to vector<16x1xf32>
    %165 = arith.divf %163, %164 : vector<16x1xf32>
    %166 = vector.broadcast %158 : vector<16x1xf32> to vector<16x32xf32>
    %167 = arith.subf %154, %166 : vector<16x32xf32>
    %cst_43 = arith.constant 9.99999996E-13 : f32
    %168 = vector.broadcast %cst_43 : f32 to vector<16x1xf32>
    %169 = arith.addf %165, %168 : vector<16x1xf32>
    %170 = math.rsqrt %169 : vector<16x1xf32>
    %171 = vector.broadcast %170 : vector<16x1xf32> to vector<16x32xf32>
    %172 = arith.mulf %167, %171 : vector<16x32xf32>
    %173 = vector.broadcast %35 : vector<1x32xf32> to vector<16x32xf32>
    %174 = arith.mulf %172, %173 : vector<16x32xf32>
    %175 = vector.broadcast %36 : vector<1x32xf32> to vector<16x32xf32>
    %176 = arith.addf %174, %175 : vector<16x32xf32>
    %177 = vector.extract_strided_slice %0 {offsets = [12, 0], sizes = [1, 96], strides = [1, 1]} : vector<20x128xf32> to vector<1x96xf32>
    %178 = vector.extract_strided_slice %0 {offsets = [13, 0], sizes = [1, 32], strides = [1, 1]} : vector<20x128xf32> to vector<1x32xf32>
    %179 = vector.extract_strided_slice %0 {offsets = [14, 0], sizes = [1, 32], strides = [1, 1]} : vector<20x128xf32> to vector<1x32xf32>
    %180 = vector.extract_strided_slice %0 {offsets = [15, 0], sizes = [1, 32], strides = [1, 1]} : vector<20x128xf32> to vector<1x32xf32>
    %181 = vector.extract_strided_slice %0 {offsets = [16, 0], sizes = [1, 64], strides = [1, 1]} : vector<20x128xf32> to vector<1x64xf32>
    %182 = vector.extract_strided_slice %0 {offsets = [17, 0], sizes = [1, 32], strides = [1, 1]} : vector<20x128xf32> to vector<1x32xf32>
    %183 = vector.extract_strided_slice %0 {offsets = [18, 0], sizes = [1, 32], strides = [1, 1]} : vector<20x128xf32> to vector<1x32xf32>
    %184 = vector.extract_strided_slice %0 {offsets = [19, 0], sizes = [1, 32], strides = [1, 1]} : vector<20x128xf32> to vector<1x32xf32>
    %c1 = arith.constant 1 : index
    %c0_44 = arith.constant 0 : index
    %c0_45 = arith.constant 0 : index
    %185 = vector.load %arg3[%c1, %c0_44, %c0_45] : memref<2x32x96xbf16, #tpu.memory_space<vmem>>, vector<1x32x96xbf16>
    %186 = vector.shape_cast %185 : vector<1x32x96xbf16> to vector<32x96xbf16>
    %c1_46 = arith.constant 1 : index
    %c0_47 = arith.constant 0 : index
    %c0_48 = arith.constant 0 : index
    %187 = vector.load %arg4[%c1_46, %c0_47, %c0_48] : memref<2x32x32xbf16, #tpu.memory_space<vmem>>, vector<1x32x32xbf16>
    %188 = vector.shape_cast %187 : vector<1x32x32xbf16> to vector<32x32xbf16>
    %c1_49 = arith.constant 1 : index
    %c0_50 = arith.constant 0 : index
    %c0_51 = arith.constant 0 : index
    %189 = vector.load %arg5[%c1_49, %c0_50, %c0_51] : memref<2x32x64xbf16, #tpu.memory_space<vmem>>, vector<1x32x64xbf16>
    %190 = vector.shape_cast %189 : vector<1x32x64xbf16> to vector<32x64xbf16>
    %c1_52 = arith.constant 1 : index
    %c0_53 = arith.constant 0 : index
    %c0_54 = arith.constant 0 : index
    %191 = vector.load %arg6[%c1_52, %c0_53, %c0_54] : memref<2x64x32xbf16, #tpu.memory_space<vmem>>, vector<1x64x32xbf16>
    %192 = vector.shape_cast %191 : vector<1x64x32xbf16> to vector<64x32xbf16>
    %193 = arith.truncf %176 : vector<16x32xf32> to vector<16x32xbf16>
    %cst_55 = arith.constant dense<0.000000e+00> : vector<16x96xf32>
    %194 = tpu.matmul %193, %186, %cst_55 {dimension_numbers = #tpu.dot_dimension_numbers<[1], [0], [0], [1], [0, 0, 1, 1], [], []>} : vector<16x32xbf16>, vector<32x96xbf16>, vector<16x96xf32> -> vector<16x96xf32>
    %195 = vector.broadcast %177 : vector<1x96xf32> to vector<16x96xf32>
    %196 = arith.addf %194, %195 : vector<16x96xf32>
    %197 = vector.extract_strided_slice %196 {offsets = [0, 0], sizes = [16, 8], strides = [1, 1]} : vector<16x96xf32> to vector<16x8xf32>
    %198 = vector.extract_strided_slice %196 {offsets = [0, 8], sizes = [16, 8], strides = [1, 1]} : vector<16x96xf32> to vector<16x8xf32>
    %199 = vector.extract_strided_slice %196 {offsets = [0, 16], sizes = [16, 8], strides = [1, 1]} : vector<16x96xf32> to vector<16x8xf32>
    %200 = vector.extract_strided_slice %196 {offsets = [0, 24], sizes = [16, 8], strides = [1, 1]} : vector<16x96xf32> to vector<16x8xf32>
    %201 = vector.shape_cast %197 : vector<16x8xf32> to vector<1x16x8xf32>
    %202 = vector.shape_cast %198 : vector<16x8xf32> to vector<1x16x8xf32>
    %203 = vector.shape_cast %199 : vector<16x8xf32> to vector<1x16x8xf32>
    %204 = vector.shape_cast %200 : vector<16x8xf32> to vector<1x16x8xf32>
    %205 = tpu.concatenate %201, %202, %203, %204 in 0 : vector<1x16x8xf32>, vector<1x16x8xf32>, vector<1x16x8xf32>, vector<1x16x8xf32> -> vector<4x16x8xf32>
    %206 = arith.truncf %205 : vector<4x16x8xf32> to vector<4x16x8xbf16>
    %207 = vector.extract_strided_slice %196 {offsets = [0, 32], sizes = [16, 8], strides = [1, 1]} : vector<16x96xf32> to vector<16x8xf32>
    %208 = vector.extract_strided_slice %196 {offsets = [0, 40], sizes = [16, 8], strides = [1, 1]} : vector<16x96xf32> to vector<16x8xf32>
    %209 = vector.extract_strided_slice %196 {offsets = [0, 48], sizes = [16, 8], strides = [1, 1]} : vector<16x96xf32> to vector<16x8xf32>
    %210 = vector.extract_strided_slice %196 {offsets = [0, 56], sizes = [16, 8], strides = [1, 1]} : vector<16x96xf32> to vector<16x8xf32>
    %211 = vector.shape_cast %207 : vector<16x8xf32> to vector<1x16x8xf32>
    %212 = vector.shape_cast %208 : vector<16x8xf32> to vector<1x16x8xf32>
    %213 = vector.shape_cast %209 : vector<16x8xf32> to vector<1x16x8xf32>
    %214 = vector.shape_cast %210 : vector<16x8xf32> to vector<1x16x8xf32>
    %215 = tpu.concatenate %211, %212, %213, %214 in 0 : vector<1x16x8xf32>, vector<1x16x8xf32>, vector<1x16x8xf32>, vector<1x16x8xf32> -> vector<4x16x8xf32>
    %216 = arith.truncf %215 : vector<4x16x8xf32> to vector<4x16x8xbf16>
    %217 = vector.extract_strided_slice %196 {offsets = [0, 64], sizes = [16, 8], strides = [1, 1]} : vector<16x96xf32> to vector<16x8xf32>
    %218 = vector.extract_strided_slice %196 {offsets = [0, 72], sizes = [16, 8], strides = [1, 1]} : vector<16x96xf32> to vector<16x8xf32>
    %219 = vector.extract_strided_slice %196 {offsets = [0, 80], sizes = [16, 8], strides = [1, 1]} : vector<16x96xf32> to vector<16x8xf32>
    %220 = vector.extract_strided_slice %196 {offsets = [0, 88], sizes = [16, 8], strides = [1, 1]} : vector<16x96xf32> to vector<16x8xf32>
    %221 = vector.shape_cast %217 : vector<16x8xf32> to vector<1x16x8xf32>
    %222 = vector.shape_cast %218 : vector<16x8xf32> to vector<1x16x8xf32>
    %223 = vector.shape_cast %219 : vector<16x8xf32> to vector<1x16x8xf32>
    %224 = vector.shape_cast %220 : vector<16x8xf32> to vector<1x16x8xf32>
    %225 = tpu.concatenate %221, %222, %223, %224 in 0 : vector<1x16x8xf32>, vector<1x16x8xf32>, vector<1x16x8xf32>, vector<1x16x8xf32> -> vector<4x16x8xf32>
    %226 = arith.truncf %225 : vector<4x16x8xf32> to vector<4x16x8xbf16>
    "tpu.trace_start"() <{level = 10 : i32, message = "hqd,hkd->hqk"}> : () -> ()
    %cst_56 = arith.constant dense<0.000000e+00> : vector<4x16x16xf32>
    %227 = tpu.matmul %206, %216, %cst_56 {dimension_numbers = #tpu.dot_dimension_numbers<[2], [2], [1], [1], [0, 0, 0, 1, 1, 1], [0], [0]>} : vector<4x16x8xbf16>, vector<4x16x8xbf16>, vector<4x16x16xf32> -> vector<4x16x16xf32>
    "tpu.trace_stop"() : () -> ()
    %cst_57 = arith.constant 0.353553385 : f32
    %228 = vector.broadcast %cst_57 : f32 to vector<4x16x16xf32>
    %229 = arith.mulf %227, %228 : vector<4x16x16xf32>
    %230 = vector.shape_cast %5 : vector<16x16xf32> to vector<1x16x16xf32>
    %231 = vector.broadcast %230 : vector<1x16x16xf32> to vector<4x16x16xf32>
    %232 = arith.addf %229, %231 : vector<4x16x16xf32>
    %cst_58 = arith.constant dense<0xFF800000> : vector<4x16xf32>
    %233 = vector.multi_reduction <maximumf>, %232, %cst_58 [2] : vector<4x16x16xf32> to vector<4x16xf32>
    %234 = vector.shape_cast %233 : vector<4x16xf32> to vector<4x16x1xf32>
    %235 = vector.broadcast %234 : vector<4x16x1xf32> to vector<4x16x16xf32>
    %236 = arith.subf %232, %235 : vector<4x16x16xf32>
    %237 = math.exp %236 : vector<4x16x16xf32>
    %cst_59 = arith.constant dense<0.000000e+00> : vector<4x16xf32>
    %238 = vector.multi_reduction <add>, %237, %cst_59 [2] : vector<4x16x16xf32> to vector<4x16xf32>
    %239 = vector.shape_cast %238 : vector<4x16xf32> to vector<4x16x1xf32>
    %240 = tpu.reciprocal %239 {approx = true} : vector<4x16x1xf32> -> vector<4x16x1xf32>
    %241 = vector.broadcast %240 : vector<4x16x1xf32> to vector<4x16x16xf32>
    %242 = arith.mulf %237, %241 : vector<4x16x16xf32>
    %243 = arith.truncf %242 : vector<4x16x16xf32> to vector<4x16x16xbf16>
    "tpu.trace_start"() <{level = 10 : i32, message = "hqk,hkd->hqd"}> : () -> ()
    %cst_60 = arith.constant dense<0.000000e+00> : vector<4x16x8xf32>
    %244 = tpu.matmul %243, %226, %cst_60 {dimension_numbers = #tpu.dot_dimension_numbers<[2], [1], [1], [2], [0, 0, 0, 1, 1, 2], [0], [0]>} : vector<4x16x16xbf16>, vector<4x16x8xbf16>, vector<4x16x8xf32> -> vector<4x16x8xf32>
    "tpu.trace_stop"() : () -> ()
    %245 = vector.extract_strided_slice %244 {offsets = [0, 0, 0], sizes = [1, 16, 8], strides = [1, 1, 1]} : vector<4x16x8xf32> to vector<1x16x8xf32>
    %246 = vector.shape_cast %245 : vector<1x16x8xf32> to vector<16x8xf32>
    %247 = vector.extract_strided_slice %244 {offsets = [1, 0, 0], sizes = [1, 16, 8], strides = [1, 1, 1]} : vector<4x16x8xf32> to vector<1x16x8xf32>
    %248 = vector.shape_cast %247 : vector<1x16x8xf32> to vector<16x8xf32>
    %249 = vector.extract_strided_slice %244 {offsets = [2, 0, 0], sizes = [1, 16, 8], strides = [1, 1, 1]} : vector<4x16x8xf32> to vector<1x16x8xf32>
    %250 = vector.shape_cast %249 : vector<1x16x8xf32> to vector<16x8xf32>
    %251 = vector.extract_strided_slice %244 {offsets = [3, 0, 0], sizes = [1, 16, 8], strides = [1, 1, 1]} : vector<4x16x8xf32> to vector<1x16x8xf32>
    %252 = vector.shape_cast %251 : vector<1x16x8xf32> to vector<16x8xf32>
    %253 = tpu.concatenate %246, %248, %250, %252 in 1 : vector<16x8xf32>, vector<16x8xf32>, vector<16x8xf32>, vector<16x8xf32> -> vector<16x32xf32>
    %254 = arith.truncf %253 : vector<16x32xf32> to vector<16x32xbf16>
    %cst_61 = arith.constant dense<0.000000e+00> : vector<16x32xf32>
    %255 = tpu.matmul %254, %188, %cst_61 {dimension_numbers = #tpu.dot_dimension_numbers<[1], [0], [0], [1], [0, 0, 1, 1], [], []>} : vector<16x32xbf16>, vector<32x32xbf16>, vector<16x32xf32> -> vector<16x32xf32>
    %256 = vector.broadcast %178 : vector<1x32xf32> to vector<16x32xf32>
    %257 = arith.addf %255, %256 : vector<16x32xf32>
    %258 = arith.addf %257, %176 : vector<16x32xf32>
    %cst_62 = arith.constant dense<0.000000e+00> : vector<16xf32>
    %259 = vector.multi_reduction <add>, %258, %cst_62 [1] : vector<16x32xf32> to vector<16xf32>
    %260 = vector.shape_cast %259 : vector<16xf32> to vector<16x1xf32>
    %cst_63 = arith.constant 3.200000e+01 : f32
    %261 = vector.broadcast %cst_63 : f32 to vector<16x1xf32>
    %262 = arith.divf %260, %261 : vector<16x1xf32>
    %263 = vector.broadcast %262 : vector<16x1xf32> to vector<16x32xf32>
    %264 = arith.subf %258, %263 : vector<16x32xf32>
    %265 = arith.mulf %264, %264 : vector<16x32xf32>
    %cst_64 = arith.constant dense<0.000000e+00> : vector<16xf32>
    %266 = vector.multi_reduction <add>, %265, %cst_64 [1] : vector<16x32xf32> to vector<16xf32>
    %267 = vector.shape_cast %266 : vector<16xf32> to vector<16x1xf32>
    %cst_65 = arith.constant 3.200000e+01 : f32
    %268 = vector.broadcast %cst_65 : f32 to vector<16x1xf32>
    %269 = arith.divf %267, %268 : vector<16x1xf32>
    %270 = vector.broadcast %262 : vector<16x1xf32> to vector<16x32xf32>
    %271 = arith.subf %258, %270 : vector<16x32xf32>
    %cst_66 = arith.constant 9.99999996E-13 : f32
    %272 = vector.broadcast %cst_66 : f32 to vector<16x1xf32>
    %273 = arith.addf %269, %272 : vector<16x1xf32>
    %274 = math.rsqrt %273 : vector<16x1xf32>
    %275 = vector.broadcast %274 : vector<16x1xf32> to vector<16x32xf32>
    %276 = arith.mulf %271, %275 : vector<16x32xf32>
    %277 = vector.broadcast %179 : vector<1x32xf32> to vector<16x32xf32>
    %278 = arith.mulf %276, %277 : vector<16x32xf32>
    %279 = vector.broadcast %180 : vector<1x32xf32> to vector<16x32xf32>
    %280 = arith.addf %278, %279 : vector<16x32xf32>
    %281 = arith.truncf %280 : vector<16x32xf32> to vector<16x32xbf16>
    %cst_67 = arith.constant dense<0.000000e+00> : vector<16x64xf32>
    %282 = tpu.matmul %281, %190, %cst_67 {dimension_numbers = #tpu.dot_dimension_numbers<[1], [0], [0], [1], [0, 0, 1, 1], [], []>} : vector<16x32xbf16>, vector<32x64xbf16>, vector<16x64xf32> -> vector<16x64xf32>
    %283 = vector.broadcast %181 : vector<1x64xf32> to vector<16x64xf32>
    %284 = arith.addf %282, %283 : vector<16x64xf32>
    %cst_68 = arith.constant 5.000000e-01 : f32
    %285 = vector.broadcast %cst_68 : f32 to vector<16x64xf32>
    %286 = arith.mulf %285, %284 : vector<16x64xf32>
    %cst_69 = arith.constant 4.471500e-02 : f32
    %287 = vector.broadcast %cst_69 : f32 to vector<16x64xf32>
    %288 = arith.mulf %287, %284 : vector<16x64xf32>
    %289 = arith.mulf %288, %284 : vector<16x64xf32>
    %290 = arith.mulf %289, %284 : vector<16x64xf32>
    %291 = arith.addf %284, %290 : vector<16x64xf32>
    %cst_70 = arith.constant 0.797884583 : f32
    %292 = vector.broadcast %cst_70 : f32 to vector<16x64xf32>
    %293 = arith.mulf %292, %291 : vector<16x64xf32>
    %294 = math.tanh %293 : vector<16x64xf32>
    %cst_71 = arith.constant 1.000000e+00 : f32
    %295 = vector.broadcast %cst_71 : f32 to vector<16x64xf32>
    %296 = arith.addf %295, %294 : vector<16x64xf32>
    %297 = arith.mulf %286, %296 : vector<16x64xf32>
    %298 = arith.truncf %297 : vector<16x64xf32> to vector<16x64xbf16>
    %cst_72 = arith.constant dense<0.000000e+00> : vector<16x32xf32>
    %299 = tpu.matmul %298, %192, %cst_72 {dimension_numbers = #tpu.dot_dimension_numbers<[1], [0], [0], [1], [0, 0, 1, 1], [], []>} : vector<16x64xbf16>, vector<64x32xbf16>, vector<16x32xf32> -> vector<16x32xf32>
    %300 = vector.broadcast %182 : vector<1x32xf32> to vector<16x32xf32>
    %301 = arith.addf %299, %300 : vector<16x32xf32>
    %302 = arith.addf %301, %280 : vector<16x32xf32>
    %cst_73 = arith.constant dense<0.000000e+00> : vector<16xf32>
    %303 = vector.multi_reduction <add>, %302, %cst_73 [1] : vector<16x32xf32> to vector<16xf32>
    %304 = vector.shape_cast %303 : vector<16xf32> to vector<16x1xf32>
    %cst_74 = arith.constant 3.200000e+01 : f32
    %305 = vector.broadcast %cst_74 : f32 to vector<16x1xf32>
    %306 = arith.divf %304, %305 : vector<16x1xf32>
    %307 = vector.broadcast %306 : vector<16x1xf32> to vector<16x32xf32>
    %308 = arith.subf %302, %307 : vector<16x32xf32>
    %309 = arith.mulf %308, %308 : vector<16x32xf32>
    %cst_75 = arith.constant dense<0.000000e+00> : vector<16xf32>
    %310 = vector.multi_reduction <add>, %309, %cst_75 [1] : vector<16x32xf32> to vector<16xf32>
    %311 = vector.shape_cast %310 : vector<16xf32> to vector<16x1xf32>
    %cst_76 = arith.constant 3.200000e+01 : f32
    %312 = vector.broadcast %cst_76 : f32 to vector<16x1xf32>
    %313 = arith.divf %311, %312 : vector<16x1xf32>
    %314 = vector.broadcast %306 : vector<16x1xf32> to vector<16x32xf32>
    %315 = arith.subf %302, %314 : vector<16x32xf32>
    %cst_77 = arith.constant 9.99999996E-13 : f32
    %316 = vector.broadcast %cst_77 : f32 to vector<16x1xf32>
    %317 = arith.addf %313, %316 : vector<16x1xf32>
    %318 = math.rsqrt %317 : vector<16x1xf32>
    %319 = vector.broadcast %318 : vector<16x1xf32> to vector<16x32xf32>
    %320 = arith.mulf %315, %319 : vector<16x32xf32>
    %321 = vector.broadcast %183 : vector<1x32xf32> to vector<16x32xf32>
    %322 = arith.mulf %320, %321 : vector<16x32xf32>
    %323 = vector.broadcast %184 : vector<1x32xf32> to vector<16x32xf32>
    %324 = arith.addf %322, %323 : vector<16x32xf32>
    %325 = arith.truncf %324 : vector<16x32xf32> to vector<16x32xbf16>
    %c0_78 = arith.constant 0 : index
    %c0_79 = arith.constant 0 : index
    %326 = vector.load %arg7[%c0_78, %c0_79] : memref<32x32xbf16, #tpu.memory_space<vmem>>, vector<32x32xbf16>
    %cst_80 = arith.constant dense<0.000000e+00> : vector<16x32xf32>
    %327 = tpu.matmul %325, %326, %cst_80 {dimension_numbers = #tpu.dot_dimension_numbers<[1], [0], [0], [1], [0, 0, 1, 1], [], []>} : vector<16x32xbf16>, vector<32x32xbf16>, vector<16x32xf32> -> vector<16x32xf32>
    %328 = vector.broadcast %3 : vector<1x32xf32> to vector<16x32xf32>
    %329 = arith.addf %327, %328 : vector<16x32xf32>
    %330 = math.tanh %329 : vector<16x32xf32>
    %331 = arith.truncf %330 : vector<16x32xf32> to vector<16x32xbf16>
    %c0_81 = arith.constant 0 : index
    %c0_82 = arith.constant 0 : index
    %332 = vector.load %arg8[%c0_81, %c0_82] : memref<32x128xbf16, #tpu.memory_space<vmem>>, vector<32x128xbf16>
    %cst_83 = arith.constant dense<0.000000e+00> : vector<16x128xf32>
    %333 = tpu.matmul %331, %332, %cst_83 {dimension_numbers = #tpu.dot_dimension_numbers<[1], [0], [0], [1], [0, 0, 1, 1], [], []>} : vector<16x32xbf16>, vector<32x128xbf16>, vector<16x128xf32> -> vector<16x128xf32>
    %334 = vector.broadcast %4 : vector<1x128xf32> to vector<16x128xf32>
    %335 = arith.addf %333, %334 : vector<16x128xf32>
    %c0_84 = arith.constant 0 : index
    %c0_85 = arith.constant 0 : index
    %336 = vector.load %arg9[%c0_84, %c0_85] : memref<16x128xf32, #tpu.memory_space<vmem>>, vector<16x128xf32>
    tpu.vector_store %arg9[%c0_84, %c0_85], %335 {strides = array<i32>} : memref<16x128xf32, #tpu.memory_space<vmem>>, vector<16x128xf32>,
    return
  }
}

</mosaic_0001>

<llo_original>
// kernel: san_bert_forward.1
$region0: #{san_bert_forward.1}
  #allocation0 [shape = 'u32[]', space=smem, size = 0x4, offset = 0x4, fixed_abs, tag = 'smem constant byte address 0x4 - core index']
  #allocation1 [shape = 'u32[72,128]{1,0:T(1,128)}', space=vmem, size = 0x9000, scoped, tag = 'internal scratch']
  %s0 = inlined_call_operand.vmem [shape: f32[16,32], index: 0, kind: input, shape index: {}]
  %s1 = inlined_call_operand.vmem [shape: f32[16,16], index: 1, kind: input, shape index: {}]
  %s2 = inlined_call_operand.vmem [shape: f32[20,128], index: 2, kind: input, shape index: {}]
  %s3 = inlined_call_operand.vmem [shape: bf16[2,32,96], index: 3, kind: input, shape index: {}]
  %s4 = inlined_call_operand.vmem [shape: bf16[2,32,32], index: 4, kind: input, shape index: {}]
  %s5 = inlined_call_operand.vmem [shape: bf16[2,32,64], index: 5, kind: input, shape index: {}]
  %s6 = inlined_call_operand.vmem [shape: bf16[2,64,32], index: 6, kind: input, shape index: {}]
  %s7 = inlined_call_operand.vmem [shape: bf16[32,32], index: 7, kind: input, shape index: {}]
  %s8 = inlined_call_operand.vmem [shape: bf16[32,128], index: 8, kind: input, shape index: {}]
  %s9 = inlined_call_operand.vmem [shape: f32[16,128], index: 9, kind: output, shape index: {}]
  %s10 = sld [smem:[#allocation0]]
  $region46: #{san_bert_forward.1} parent=0
    _
  %s12 = ssub.s32 1, %s10
  %s13 = scalar_select 0, %s12, %s10
  // Predicated region
  $region2: #{san_bert_forward.1} parent=0 // pred_check
    _
  $region3: #{san_bert_forward.1} parent=0 // pred_check_branch
    %15 = sbr.rel (0) target = $region5
  $region4: #{san_bert_forward.1} parent=0 // pred_region
    _
  $region5: #{san_bert_forward.1} parent=0 // pred_fallthru
    _
  // Predicated region
  $region6: #{san_bert_forward.1} parent=0 // pred_check
    _
  $region7: #{san_bert_forward.1} parent=0 // pred_check_branch
    %17 = sbr.rel (0) target = $region9
  $region8: #{san_bert_forward.1} parent=0 // pred_region
    _
  $region9: #{san_bert_forward.1} parent=0 // pred_fallthru
    _
  // Predicated region
  $region10: #{san_bert_forward.1} parent=0 // pred_check
    _
  $region11: #{san_bert_forward.1} parent=0 // pred_check_branch
    %19 = sbr.rel (0) target = $region13
  $region12: #{san_bert_forward.1} parent=0 // pred_region
    _
  $region13: #{san_bert_forward.1} parent=0 // pred_fallthru
    _
  // Predicated region
  $region14: #{san_bert_forward.1} parent=0 // pred_check
    _
  $region15: #{san_bert_forward.1} parent=0 // pred_check_branch
    %21 = sbr.rel (0) target = $region17
  $region16: #{san_bert_forward.1} parent=0 // pred_region
    _
  $region17: #{san_bert_forward.1} parent=0 // pred_fallthru
    _
  // Predicated region
  $region18: #{san_bert_forward.1} parent=0 // pred_check
    _
  $region19: #{san_bert_forward.1} parent=0 // pred_check_branch
    %23 = sbr.rel (0) target = $region21
  $region20: #{san_bert_forward.1} parent=0 // pred_region
    _
  $region21: #{san_bert_forward.1} parent=0 // pred_fallthru
    _
  // Predicated region
  $region22: #{san_bert_forward.1} parent=0 // pred_check
    _
  $region23: #{san_bert_forward.1} parent=0 // pred_check_branch
    %25 = sbr.rel (0) target = $region25
  $region24: #{san_bert_forward.1} parent=0 // pred_region
    _
  $region25: #{san_bert_forward.1} parent=0 // pred_fallthru
    _
  // Predicated region
  $region26: #{san_bert_forward.1} parent=0 // pred_check
    _
  $region27: #{san_bert_forward.1} parent=0 // pred_check_branch
    %27 = sbr.rel (0) target = $region29
  $region28: #{san_bert_forward.1} parent=0 // pred_region
    _
  $region29: #{san_bert_forward.1} parent=0 // pred_fallthru
    _
  // Predicated region
  $region30: #{san_bert_forward.1} parent=0 // pred_check
    _
  $region31: #{san_bert_forward.1} parent=0 // pred_check_branch
    %29 = sbr.rel (0) target = $region33
  $region32: #{san_bert_forward.1} parent=0 // pred_region
    _
  $region33: #{san_bert_forward.1} parent=0 // pred_fallthru
    _
  // Predicated region
  $region34: #{san_bert_forward.1} parent=0 // pred_check
    _
  $region35: #{san_bert_forward.1} parent=0 // pred_check_branch
    %31 = sbr.rel (0) target = $region37
  $region36: #{san_bert_forward.1} parent=0 // pred_region
    _
  $region37: #{san_bert_forward.1} parent=0 // pred_fallthru
    _
  %v33 = vld [vmem:[%s2] sm:$0xff]
  %v34 = vld [vmem:[%s2 + $0x8] sm:$0xff]
  %v35 = vld [vmem:[%s2 + $0x10] sm:$0xf]
  %v36 = vld [vmem:[%s1] sm:$0xff]
  %v37 = vld [vmem:[%s1 + $0x8] sm:$0xff]
  %v38 = vld [vmem:[%s0] sm:$0xff]
  %v39 = vld [vmem:[%s0 + $0x8] sm:$0xff]
  %vm40 = vcmask 261120
  %v41 = vsel %vm40, %v38, 0.0
  %42 = vadd.xlane.f32.xlu0 %v41
  %v43 = vpop.xlane.xlu0 %42
  %v44 = vsel %vm40, %v39, 0.0
  %45 = vadd.xlane.f32.xlu0 %v44
  %v46 = vpop.xlane.xlu0 %45
  %v47 = vrcp.pop 32.0
  %v48 = vmul.f32 32.0, %v47
  %v49 = vsub.f32 1.0, %v48
  %v50 = vmul.f32 %v47, %v49
  %v51 = vadd.f32 %v47, %v50
  %vm52 = vweird.f32 %v47
  %v53 = vsel %vm52, %v47, %v51
  %v54 = vmul.f32 %v43, %v53
  %v55 = vmul.f32 %v46, %v53
  %v56 = vsub.f32 %v38, %v54
  %v57 = vsub.f32 %v39, %v55
  %v58 = vmul.f32 %v56, %v56
  %v59 = vmul.f32 %v57, %v57
  %v60 = vsel %vm40, %v58, 0.0
  %61 = vadd.xlane.f32.xlu0 %v60
  %v62 = vpop.xlane.xlu0 %61
  %v63 = vsel %vm40, %v59, 0.0
  %64 = vadd.xlane.f32.xlu0 %v63
  %v65 = vpop.xlane.xlu0 %64
  %v66 = vmul.f32 %v62, %v53
  %v67 = vmul.f32 %v65, %v53
  %v68 = vadd.f32 %v66, 1e-12
  %v69 = vadd.f32 %v67, 1e-12
  %v70 = vrsqrt.pop %v68
  %v71 = vmul.f32 %v70, %v68
  %v72 = vmul.f32 %v71, %v70
  %v73 = vmul.f32 0.5, %v72
  %v74 = vsub.f32 1.5, %v73
  %v75 = vmul.f32 %v70, %v74
  %vm76 = vweird.f32 %v68
  %vm77 = vweird.f32 %v70
  %vm78 = vmor %vm76, %vm77
  %v79 = vsel %vm78, %v70, %v75
  %v80 = vrsqrt.pop %v69
  %v81 = vmul.f32 %v80, %v69
  %v82 = vmul.f32 %v81, %v80
  %v83 = vmul.f32 0.5, %v82
  %v84 = vsub.f32 1.5, %v83
  %v85 = vmul.f32 %v80, %v84
  %vm86 = vweird.f32 %v69
  %vm87 = vweird.f32 %v80
  %vm88 = vmor %vm86, %vm87
  %v89 = vsel %vm88, %v80, %v85
  %v90 = vmul.f32 %v56, %v79
  %v91 = vmul.f32 %v57, %v89
  %v92 = vperm.slane %v33, 0
  %v93 = vmul.f32 %v90, %v92
  %v94 = vmul.f32 %v91, %v92
  %v95 = vperm.slane %v33, 1
  %v96 = vadd.f32 %v93, %v95
  %v97 = vadd.f32 %v94, %v95
  %v98 = vld [vmem:[%s3] sm:$0xf]
  %v99 = vld [vmem:[%s3 + $0x4] sm:$0xf]
  %v100 = vld [vmem:[%s3 + $0x8] sm:$0xf]
  %v101 = vld [vmem:[%s3 + $0xc] sm:$0xf]
  %v102 = vld [vmem:[%s4] sm:$0xf]
  %v103 = vld [vmem:[%s4 + $0x4] sm:$0xf]
  %v104 = vld [vmem:[%s4 + $0x8] sm:$0xf]
  %v105 = vld [vmem:[%s4 + $0xc] sm:$0xf]
  %v106 = vld [vmem:[%s5] sm:$0xf]
  %v107 = vld [vmem:[%s5 + $0x4] sm:$0xf]
  %v108 = vld [vmem:[%s5 + $0x8] sm:$0xf]
  %v109 = vld [vmem:[%s5 + $0xc] sm:$0xf]
  %v110 = vld [vmem:[%s6] sm:$0xf]
  %v111 = vld [vmem:[%s6 + $0x4] sm:$0xf]
  %v112 = vld [vmem:[%s6 + $0x8] sm:$0xf]
  %v113 = vld [vmem:[%s6 + $0xc] sm:$0xf]
  %v114 = vld [vmem:[%s6 + $0x10] sm:$0xf]
  %v115 = vld [vmem:[%s6 + $0x14] sm:$0xf]
  %v116 = vld [vmem:[%s6 + $0x18] sm:$0xf]
  %v117 = vld [vmem:[%s6 + $0x1c] sm:$0xf]
  %v118 = vpack.c.bf16 %v97, %v96
  %v119 = vperm.slane %v33, 4
  %v124 = vunpack.c.l.b16 %v98
  %v125 = vunpack.c.l.b16 %v99
  %v126 = vunpack.c.l.b16 %v100
  %v127 = vunpack.c.l.b16 %v101
  %v128 = vpack.c.b16 %v125, %v124
  %v129 = vpack.c.b16 %v127, %v126
  %v133 = vsel %vm40, %v118, 0
  %135 = vmatpush.bf16.msra.mxu0 0
  %136 = vmatpush.bf16.msra.mxu0 0
  %137 = vmatpush.bf16.msra.mxu0 0
  %138 = vmatpush.bf16.msra.mxu0 0
  %139 = vmatpush.bf16.msra.mxu0 0
  %140 = vmatpush.bf16.msra.mxu0 0
  %141 = vmatpush.bf16.msra.mxu0 %v129
  %142 = vmatpush.bf16.msra.mxu0 %v128
  %143 = vmatmul.bf16.gmra.mxu0 %v133
  %v144 = vpop.f32.mrf.mxu0
  %v145 = vadd.f32 %v119, %v144
  %v146 = vpop.f32.mrf.mxu0
  %v147 = vadd.f32 %v119, %v146
  %148 = vdwg.mxu0
  %151 = vrot.lane.b32.xlu0 %v145, 120
  %v152 = vpop.permute.xlu0 %151
  %153 = vrot.lane.b32.xlu0 %v147, 120
  %v154 = vpop.permute.xlu0 %153
  %157 = vrot.lane.b32.xlu0 %v145, 112
  %v158 = vpop.permute.xlu0 %157
  %159 = vrot.lane.b32.xlu0 %v147, 112
  %v160 = vpop.permute.xlu0 %159
  %163 = vrot.lane.b32.xlu0 %v145, 104
  %v164 = vpop.permute.xlu0 %163
  %165 = vrot.lane.b32.xlu0 %v147, 104
  %v166 = vpop.permute.xlu0 %165
  %v169 = vpack.c.bf16 %v145, %v145
  %v170 = vpack.c.bf16 %v147, %v147
  %v171 = vpack.c.bf16 %v152, %v152
  %v172 = vpack.c.bf16 %v154, %v154
  %v173 = vpack.c.bf16 %v158, %v158
  %v174 = vpack.c.bf16 %v160, %v160
  %v175 = vpack.c.bf16 %v164, %v164
  %v176 = vpack.c.bf16 %v166, %v166
  %v179 = vunpack.c.l.b16 %v169
  %v180 = vunpack.c.l.b16 %v170
  %v181 = vpack.c.b16 %v180, %v179
  %182 = vrot.lane.b32.xlu0 %v181, 96
  %v183 = vpop.permute.xlu0 %182
  %vm184 = vcmask 64512
  %v186 = vsel %vm184, %v181, 0
  %v189 = vsel %vm184, %v183, 0
  %191 = vmatpush.bf16.xpose.msra.mxu0 0
  %192 = vmatpush.bf16.xpose.msra.mxu0 0
  %193 = vmatpush.bf16.xpose.msra.mxu0 0
  %194 = vmatpush.bf16.xpose.msra.mxu0 0
  %195 = vmatpush.bf16.xpose.msra.mxu0 0
  %196 = vmatpush.bf16.xpose.msra.mxu0 0
  %197 = vmatpush.bf16.xpose.msra.mxu0 0
  %198 = vmatpush.bf16.xpose.msra.mxu0 %v189
  %199 = vmatmul.bf16.gmra.mxu0 %v186
  %v200 = vpop.f32.mrf.mxu0
  %v201 = vadd.f32 0.0, %v200
  %v202 = vpop.f32.mrf.mxu0
  %v203 = vadd.f32 0.0, %v202
  %204 = vdwg.mxu0
  %v207 = vunpack.c.l.b16 %v171
  %v208 = vunpack.c.l.b16 %v172
  %v209 = vpack.c.b16 %v208, %v207
  %210 = vrot.lane.b32.xlu0 %v209, 96
  %v211 = vpop.permute.xlu0 %210
  %v213 = vsel %vm184, %v209, 0
  %v216 = vsel %vm184, %v211, 0
  %218 = vmatpush.bf16.xpose.msra.mxu0 0
  %219 = vmatpush.bf16.xpose.msra.mxu0 0
  %220 = vmatpush.bf16.xpose.msra.mxu0 0
  %221 = vmatpush.bf16.xpose.msra.mxu0 0
  %222 = vmatpush.bf16.xpose.msra.mxu0 0
  %223 = vmatpush.bf16.xpose.msra.mxu0 0
  %224 = vmatpush.bf16.xpose.msra.mxu0 0
  %225 = vmatpush.bf16.xpose.msra.mxu0 %v216
  %226 = vmatmul.bf16.gmra.mxu0 %v213
  %v227 = vpop.f32.mrf.mxu0
  %v228 = vadd.f32 0.0, %v227
  %v229 = vpop.f32.mrf.mxu0
  %v230 = vadd.f32 0.0, %v229
  %231 = vdwg.mxu0
  %v234 = vunpack.c.l.b16 %v173
  %v235 = vunpack.c.l.b16 %v174
  %v236 = vpack.c.b16 %v235, %v234
  %237 = vrot.lane.b32.xlu0 %v236, 96
  %v238 = vpop.permute.xlu0 %237
  %v240 = vsel %vm184, %v236, 0
  %v243 = vsel %vm184, %v238, 0
  %245 = vmatpush.bf16.xpose.msra.mxu0 0
  %246 = vmatpush.bf16.xpose.msra.mxu0 0
  %247 = vmatpush.bf16.xpose.msra.mxu0 0
  %248 = vmatpush.bf16.xpose.msra.mxu0 0
  %249 = vmatpush.bf16.xpose.msra.mxu0 0
  %250 = vmatpush.bf16.xpose.msra.mxu0 0
  %251 = vmatpush.bf16.xpose.msra.mxu0 0
  %252 = vmatpush.bf16.xpose.msra.mxu0 %v243
  %253 = vmatmul.bf16.gmra.mxu0 %v240
  %v254 = vpop.f32.mrf.mxu0
  %v255 = vadd.f32 0.0, %v254
  %v256 = vpop.f32.mrf.mxu0
  %v257 = vadd.f32 0.0, %v256
  %258 = vdwg.mxu0
  %v261 = vunpack.c.l.b16 %v175
  %v262 = vunpack.c.l.b16 %v176
  %v263 = vpack.c.b16 %v262, %v261
  %264 = vrot.lane.b32.xlu0 %v263, 96
  %v265 = vpop.permute.xlu0 %264
  %v267 = vsel %vm184, %v263, 0
  %v270 = vsel %vm184, %v265, 0
  %272 = vmatpush.bf16.xpose.msra.mxu0 0
  %273 = vmatpush.bf16.xpose.msra.mxu0 0
  %274 = vmatpush.bf16.xpose.msra.mxu0 0
  %275 = vmatpush.bf16.xpose.msra.mxu0 0
  %276 = vmatpush.bf16.xpose.msra.mxu0 0
  %277 = vmatpush.bf16.xpose.msra.mxu0 0
  %278 = vmatpush.bf16.xpose.msra.mxu0 0
  %279 = vmatpush.bf16.xpose.msra.mxu0 %v270
  %280 = vmatmul.bf16.gmra.mxu0 %v267
  %v281 = vpop.f32.mrf.mxu0
  %v282 = vadd.f32 0.0, %v281
  %v283 = vpop.f32.mrf.mxu0
  %v284 = vadd.f32 0.0, %v283
  %285 = vdwg.mxu0
  %v286 = vmul.f32 %v201, 0.35355338
  %v287 = vmul.f32 %v203, 0.35355338
  %v288 = vmul.f32 %v228, 0.35355338
  %v289 = vmul.f32 %v230, 0.35355338
  %v290 = vmul.f32 %v255, 0.35355338
  %v291 = vmul.f32 %v257, 0.35355338
  %v292 = vmul.f32 %v282, 0.35355338
  %v293 = vmul.f32 %v284, 0.35355338
  %v294 = vadd.f32 %v286, %v36
  %v295 = vadd.f32 %v287, %v37
  %v296 = vadd.f32 %v288, %v36
  %v297 = vadd.f32 %v289, %v37
  %v298 = vadd.f32 %v290, %v36
  %v299 = vadd.f32 %v291, %v37
  %v300 = vadd.f32 %v292, %v36
  %v301 = vadd.f32 %v293, %v37
  %vm302 = vcmask 130048
  %v303 = vsel %vm302, %v294, -inf
  %304 = vmax.xlane.f32.xlu0 %v303
  %v305 = vpop.xlane.xlu0 %304
  %v306 = vsel %vm302, %v295, -inf
  %307 = vmax.xlane.f32.xlu0 %v306
  %v308 = vpop.xlane.xlu0 %307
  %v309 = vsel %vm302, %v296, -inf
  %310 = vmax.xlane.f32.xlu0 %v309
  %v311 = vpop.xlane.xlu0 %310
  %v312 = vsel %vm302, %v297, -inf
  %313 = vmax.xlane.f32.xlu0 %v312
  %v314 = vpop.xlane.xlu0 %313
  %v315 = vsel %vm302, %v298, -inf
  %316 = vmax.xlane.f32.xlu0 %v315
  %v317 = vpop.xlane.xlu0 %316
  %v318 = vsel %vm302, %v299, -inf
  %319 = vmax.xlane.f32.xlu0 %v318
  %v320 = vpop.xlane.xlu0 %319
  %v321 = vsel %vm302, %v300, -inf
  %322 = vmax.xlane.f32.xlu0 %v321
  %v323 = vpop.xlane.xlu0 %322
  %v324 = vsel %vm302, %v301, -inf
  %325 = vmax.xlane.f32.xlu0 %v324
  %v326 = vpop.xlane.xlu0 %325
  %v327 = vsub.f32 %v294, %v305
  %v328 = vsub.f32 %v295, %v308
  %v329 = vsub.f32 %v296, %v311
  %v330 = vsub.f32 %v297, %v314
  %v331 = vsub.f32 %v298, %v317
  %v332 = vsub.f32 %v299, %v320
  %v333 = vsub.f32 %v300, %v323
  %v334 = vsub.f32 %v301, %v326
  %v335 = vmul.f32 %v327, 1.442695
  %v336 = vpow.pop %v335
  %v337 = vmul.f32 %v328, 1.442695
  %v338 = vpow.pop %v337
  %v339 = vmul.f32 %v329, 1.442695
  %v340 = vpow.pop %v339
  %v341 = vmul.f32 %v330, 1.442695
  %v342 = vpow.pop %v341
  %v343 = vmul.f32 %v331, 1.442695
  %v344 = vpow.pop %v343
  %v345 = vmul.f32 %v332, 1.442695
  %v346 = vpow.pop %v345
  %v347 = vmul.f32 %v333, 1.442695
  %v348 = vpow.pop %v347
  %v349 = vmul.f32 %v334, 1.442695
  %v350 = vpow.pop %v349
  %v351 = vsel %vm302, %v336, 0.0
  %352 = vadd.xlane.f32.xlu0 %v351
  %v353 = vpop.xlane.xlu0 %352
  %v354 = vsel %vm302, %v338, 0.0
  %355 = vadd.xlane.f32.xlu0 %v354
  %v356 = vpop.xlane.xlu0 %355
  %v357 = vsel %vm302, %v340, 0.0
  %358 = vadd.xlane.f32.xlu0 %v357
  %v359 = vpop.xlane.xlu0 %358
  %v360 = vsel %vm302, %v342, 0.0
  %361 = vadd.xlane.f32.xlu0 %v360
  %v362 = vpop.xlane.xlu0 %361
  %v363 = vsel %vm302, %v344, 0.0
  %364 = vadd.xlane.f32.xlu0 %v363
  %v365 = vpop.xlane.xlu0 %364
  %v366 = vsel %vm302, %v346, 0.0
  %367 = vadd.xlane.f32.xlu0 %v366
  %v368 = vpop.xlane.xlu0 %367
  %v369 = vsel %vm302, %v348, 0.0
  %370 = vadd.xlane.f32.xlu0 %v369
  %v371 = vpop.xlane.xlu0 %370
  %v372 = vsel %vm302, %v350, 0.0
  %373 = vadd.xlane.f32.xlu0 %v372
  %v374 = vpop.xlane.xlu0 %373
  %v375 = vrcp.pop %v353
  %v376 = vrcp.pop %v356
  %v377 = vrcp.pop %v359
  %v378 = vrcp.pop %v362
  %v379 = vrcp.pop %v365
  %v380 = vrcp.pop %v368
  %v381 = vrcp.pop %v371
  %v382 = vrcp.pop %v374
  %v383 = vmul.f32 %v336, %v375
  %v384 = vmul.f32 %v338, %v376
  %v385 = vmul.f32 %v340, %v377
  %v386 = vmul.f32 %v342, %v378
  %v387 = vmul.f32 %v344, %v379
  %v388 = vmul.f32 %v346, %v380
  %v389 = vmul.f32 %v348, %v381
  %v390 = vmul.f32 %v350, %v382
  %v391 = vpack.c.bf16 %v383, %v383
  %v392 = vpack.c.bf16 %v384, %v384
  %v393 = vpack.c.bf16 %v385, %v385
  %v394 = vpack.c.bf16 %v386, %v386
  %v395 = vpack.c.bf16 %v387, %v387
  %v396 = vpack.c.bf16 %v388, %v388
  %v397 = vpack.c.bf16 %v389, %v389
  %v398 = vpack.c.bf16 %v390, %v390
  %v401 = vunpack.c.l.b16 %v391
  %v402 = vunpack.c.l.b16 %v392
  %v403 = vpack.c.b16 %v402, %v401
  %404 = vrot.lane.b32.xlu0 %v181, 64
  %v405 = vpop.permute.xlu0 %404
  %v408 = vsel %vm302, %v403, 0
  %410 = vmatpush.bf16.msra.mxu0 0
  %411 = vmatpush.bf16.msra.mxu0 0
  %412 = vmatpush.bf16.msra.mxu0 0
  %413 = vmatpush.bf16.msra.mxu0 0
  %414 = vmatpush.bf16.msra.mxu0 0
  %415 = vmatpush.bf16.msra.mxu0 0
  %416 = vmatpush.bf16.msra.mxu0 0
  %417 = vmatpush.bf16.msra.mxu0 %v405
  %418 = vmatmul.bf16.gmra.mxu0 %v408
  %v419 = vpop.f32.mrf.mxu0
  %v420 = vadd.f32 0.0, %v419
  %v421 = vpop.f32.mrf.mxu0
  %v422 = vadd.f32 0.0, %v421
  %423 = vdwg.mxu0
  %v426 = vunpack.c.l.b16 %v393
  %v427 = vunpack.c.l.b16 %v394
  %v428 = vpack.c.b16 %v427, %v426
  %429 = vrot.lane.b32.xlu0 %v209, 64
  %v430 = vpop.permute.xlu0 %429
  %v433 = vsel %vm302, %v428, 0
  %435 = vmatpush.bf16.msra.mxu0 0
  %436 = vmatpush.bf16.msra.mxu0 0
  %437 = vmatpush.bf16.msra.mxu0 0
  %438 = vmatpush.bf16.msra.mxu0 0
  %439 = vmatpush.bf16.msra.mxu0 0
  %440 = vmatpush.bf16.msra.mxu0 0
  %441 = vmatpush.bf16.msra.mxu0 0
  %442 = vmatpush.bf16.msra.mxu0 %v430
  %443 = vmatmul.bf16.gmra.mxu0 %v433
  %v444 = vpop.f32.mrf.mxu0
  %v445 = vadd.f32 0.0, %v444
  %v446 = vpop.f32.mrf.mxu0
  %v447 = vadd.f32 0.0, %v446
  %448 = vdwg.mxu0
  %v451 = vunpack.c.l.b16 %v395
  %v452 = vunpack.c.l.b16 %v396
  %v453 = vpack.c.b16 %v452, %v451
  %454 = vrot.lane.b32.xlu0 %v236, 64
  %v455 = vpop.permute.xlu0 %454
  %v458 = vsel %vm302, %v453, 0
  %460 = vmatpush.bf16.msra.mxu0 0
  %461 = vmatpush.bf16.msra.mxu0 0
  %462 = vmatpush.bf16.msra.mxu0 0
  %463 = vmatpush.bf16.msra.mxu0 0
  %464 = vmatpush.bf16.msra.mxu0 0
  %465 = vmatpush.bf16.msra.mxu0 0
  %466 = vmatpush.bf16.msra.mxu0 0
  %467 = vmatpush.bf16.msra.mxu0 %v455
  %468 = vmatmul.bf16.gmra.mxu0 %v458
  %v469 = vpop.f32.mrf.mxu0
  %v470 = vadd.f32 0.0, %v469
  %v471 = vpop.f32.mrf.mxu0
  %v472 = vadd.f32 0.0, %v471
  %473 = vdwg.mxu0
  %v476 = vunpack.c.l.b16 %v397
  %v477 = vunpack.c.l.b16 %v398
  %v478 = vpack.c.b16 %v477, %v476
  %479 = vrot.lane.b32.xlu0 %v263, 64
  %v480 = vpop.permute.xlu0 %479
  %v483 = vsel %vm302, %v478, 0
  %485 = vmatpush.bf16.msra.mxu0 0
  %486 = vmatpush.bf16.msra.mxu0 0
  %487 = vmatpush.bf16.msra.mxu0 0
  %488 = vmatpush.bf16.msra.mxu0 0
  %489 = vmatpush.bf16.msra.mxu0 0
  %490 = vmatpush.bf16.msra.mxu0 0
  %491 = vmatpush.bf16.msra.mxu0 0
  %492 = vmatpush.bf16.msra.mxu0 %v480
  %493 = vmatmul.bf16.gmra.mxu0 %v483
  %v494 = vpop.f32.mrf.mxu0
  %v495 = vadd.f32 0.0, %v494
  %v496 = vpop.f32.mrf.mxu0
  %v497 = vadd.f32 0.0, %v496
  %498 = vdwg.mxu0
  %501 = vrot.lane.b32.xlu0 %v445, 8
  %v502 = vpop.permute.xlu0 %501
  %503 = vrot.lane.b32.xlu0 %v447, 8
  %v504 = vpop.permute.xlu0 %503
  %509 = vrot.lane.b32.xlu0 %v470, 16
  %v510 = vpop.permute.xlu0 %509
  %511 = vrot.lane.b32.xlu0 %v472, 16
  %v512 = vpop.permute.xlu0 %511
  %517 = vrot.lane.b32.xlu0 %v495, 24
  %v518 = vpop.permute.xlu0 %517
  %519 = vrot.lane.b32.xlu0 %v497, 24
  %v520 = vpop.permute.xlu0 %519
  %v523 = vsel %vm184, %v420, %v502
  %v524 = vsel %vm184, %v422, %v504
  %v525 = vsel %vm302, %v523, %v510
  %v526 = vsel %vm302, %v524, %v512
  %vm527 = vcmask 195584
  %v528 = vsel %vm527, %v525, %v518
  %v529 = vsel %vm527, %v526, %v520
  %v530 = vpack.c.bf16 %v529, %v528
  %v531 = vperm.slane %v33, 5
  %v536 = vunpack.c.l.b16 %v102
  %v537 = vunpack.c.l.b16 %v103
  %v538 = vunpack.c.l.b16 %v104
  %v539 = vunpack.c.l.b16 %v105
  %v540 = vpack.c.b16 %v537, %v536
  %v541 = vpack.c.b16 %v539, %v538
  %v545 = vsel %vm40, %v530, 0
  %547 = vmatpush.bf16.msra.mxu0 0
  %548 = vmatpush.bf16.msra.mxu0 0
  %549 = vmatpush.bf16.msra.mxu0 0
  %550 = vmatpush.bf16.msra.mxu0 0
  %551 = vmatpush.bf16.msra.mxu0 0
  %552 = vmatpush.bf16.msra.mxu0 0
  %553 = vmatpush.bf16.msra.mxu0 %v541
  %554 = vmatpush.bf16.msra.mxu0 %v540
  %555 = vmatmul.bf16.gmra.mxu0 %v545
  %v556 = vpop.f32.mrf.mxu0
  %v557 = vadd.f32 %v531, %v556
  %v558 = vpop.f32.mrf.mxu0
  %v559 = vadd.f32 %v531, %v558
  %560 = vdwg.mxu0
  %v561 = vadd.f32 %v557, %v96
  %v562 = vadd.f32 %v559, %v97
  %v563 = vsel %vm40, %v561, 0.0
  %564 = vadd.xlane.f32.xlu0 %v563
  %v565 = vpop.xlane.xlu0 %564
  %v566 = vsel %vm40, %v562, 0.0
  %567 = vadd.xlane.f32.xlu0 %v566
  %v568 = vpop.xlane.xlu0 %567
  %v569 = vmul.f32 %v565, %v53
  %v570 = vmul.f32 %v568, %v53
  %v571 = vsub.f32 %v561, %v569
  %v572 = vsub.f32 %v562, %v570
  %v573 = vmul.f32 %v571, %v571
  %v574 = vmul.f32 %v572, %v572
  %v575 = vsel %vm40, %v573, 0.0
  %576 = vadd.xlane.f32.xlu0 %v575
  %v577 = vpop.xlane.xlu0 %576
  %v578 = vsel %vm40, %v574, 0.0
  %579 = vadd.xlane.f32.xlu0 %v578
  %v580 = vpop.xlane.xlu0 %579
  %v581 = vmul.f32 %v577, %v53
  %v582 = vmul.f32 %v580, %v53
  %v583 = vadd.f32 %v581, 1e-12
  %v584 = vadd.f32 %v582, 1e-12
  %v585 = vrsqrt.pop %v583
  %v586 = vmul.f32 %v585, %v583
  %v587 = vmul.f32 %v586, %v585
  %v588 = vmul.f32 0.5, %v587
  %v589 = vsub.f32 1.5, %v588
  %v590 = vmul.f32 %v585, %v589
  %vm591 = vweird.f32 %v583
  %vm592 = vweird.f32 %v585
  %vm593 = vmor %vm591, %vm592
  %v594 = vsel %vm593, %v585, %v590
  %v595 = vrsqrt.pop %v584
  %v596 = vmul.f32 %v595, %v584
  %v597 = vmul.f32 %v596, %v595
  %v598 = vmul.f32 0.5, %v597
  %v599 = vsub.f32 1.5, %v598
  %v600 = vmul.f32 %v595, %v599
  %vm601 = vweird.f32 %v584
  %vm602 = vweird.f32 %v595
  %vm603 = vmor %vm601, %vm602
  %v604 = vsel %vm603, %v595, %v600
  %v605 = vmul.f32 %v571, %v594
  %v606 = vmul.f32 %v572, %v604
  %v607 = vperm.slane %v33, 6
  %v608 = vmul.f32 %v605, %v607
  %v609 = vmul.f32 %v606, %v607
  %v610 = vperm.slane %v33, 7
  %v611 = vadd.f32 %v608, %v610
  %v612 = vadd.f32 %v609, %v610
  %v613 = vpack.c.bf16 %v612, %v611
  %v614 = vperm.slane %v34, 0
  %v619 = vunpack.c.l.b16 %v106
  %v620 = vunpack.c.l.b16 %v107
  %v621 = vunpack.c.l.b16 %v108
  %v622 = vunpack.c.l.b16 %v109
  %v623 = vpack.c.b16 %v620, %v619
  %v624 = vpack.c.b16 %v622, %v621
  %v628 = vsel %vm40, %v613, 0
  %630 = vmatpush.bf16.msra.mxu0 0
  %631 = vmatpush.bf16.msra.mxu0 0
  %632 = vmatpush.bf16.msra.mxu0 0
  %633 = vmatpush.bf16.msra.mxu0 0
  %634 = vmatpush.bf16.msra.mxu0 0
  %635 = vmatpush.bf16.msra.mxu0 0
  %636 = vmatpush.bf16.msra.mxu0 %v624
  %637 = vmatpush.bf16.msra.mxu0 %v623
  %638 = vmatmul.bf16.gmra.mxu0 %v628
  %v639 = vpop.f32.mrf.mxu0
  %v640 = vadd.f32 %v614, %v639
  %v641 = vpop.f32.mrf.mxu0
  %v642 = vadd.f32 %v614, %v641
  %643 = vdwg.mxu0
  %v644 = vmul.f32 %v640, 0.5
  %v645 = vmul.f32 %v642, 0.5
  %v646 = vmul.f32 %v640, 0.044715
  %v647 = vmul.f32 %v642, 0.044715
  %v648 = vmul.f32 %v646, %v640
  %v649 = vmul.f32 %v647, %v642
  %v650 = vmul.f32 %v648, %v640
  %v651 = vmul.f32 %v649, %v642
  %v652 = vadd.f32 %v640, %v650
  %v653 = vadd.f32 %v642, %v651
  %v654 = vmul.f32 %v652, 0.7978846
  %v655 = vmul.f32 %v653, 0.7978846
  %v656 = vtanh.pop %v654
  %v657 = vtanh.pop %v655
  %v658 = vadd.f32 %v656, 1.0
  %v659 = vadd.f32 %v657, 1.0
  %v660 = vmul.f32 %v644, %v658
  %v661 = vmul.f32 %v645, %v659
  %v662 = vpack.c.bf16 %v661, %v660
  %v663 = vperm.slane %v34, 1
  %v672 = vunpack.c.l.b16 %v110
  %v673 = vunpack.c.l.b16 %v111
  %v674 = vunpack.c.l.b16 %v112
  %v675 = vunpack.c.l.b16 %v113
  %v676 = vunpack.c.l.b16 %v114
  %v677 = vunpack.c.l.b16 %v115
  %v678 = vunpack.c.l.b16 %v116
  %v679 = vunpack.c.l.b16 %v117
  %v680 = vpack.c.b16 %v673, %v672
  %v681 = vpack.c.b16 %v675, %v674
  %v682 = vpack.c.b16 %v677, %v676
  %v683 = vpack.c.b16 %v679, %v678
  %vm688 = vcmask 523264
  %v690 = vsel %vm688, %v662, 0
  %692 = vmatpush.bf16.msra.mxu0 0
  %693 = vmatpush.bf16.msra.mxu0 0
  %694 = vmatpush.bf16.msra.mxu0 0
  %695 = vmatpush.bf16.msra.mxu0 0
  %696 = vmatpush.bf16.msra.mxu0 %v683
  %697 = vmatpush.bf16.msra.mxu0 %v682
  %698 = vmatpush.bf16.msra.mxu0 %v681
  %699 = vmatpush.bf16.msra.mxu0 %v680
  %700 = vmatmul.bf16.gmra.mxu0 %v690
  %v701 = vpop.f32.mrf.mxu0
  %v702 = vadd.f32 %v663, %v701
  %v703 = vpop.f32.mrf.mxu0
  %v704 = vadd.f32 %v663, %v703
  %705 = vdwg.mxu0
  %v706 = vadd.f32 %v702, %v611
  %v707 = vadd.f32 %v704, %v612
  %v708 = vsel %vm40, %v706, 0.0
  %709 = vadd.xlane.f32.xlu0 %v708
  %v710 = vpop.xlane.xlu0 %709
  %v711 = vsel %vm40, %v707, 0.0
  %712 = vadd.xlane.f32.xlu0 %v711
  %v713 = vpop.xlane.xlu0 %712
  %v714 = vmul.f32 %v710, %v53
  %v715 = vmul.f32 %v713, %v53
  %v716 = vsub.f32 %v706, %v714
  %v717 = vsub.f32 %v707, %v715
  %v718 = vmul.f32 %v716, %v716
  %v719 = vmul.f32 %v717, %v717
  %v720 = vsel %vm40, %v718, 0.0
  %721 = vadd.xlane.f32.xlu0 %v720
  %v722 = vpop.xlane.xlu0 %721
  %v723 = vsel %vm40, %v719, 0.0
  %724 = vadd.xlane.f32.xlu0 %v723
  %v725 = vpop.xlane.xlu0 %724
  %v726 = vmul.f32 %v722, %v53
  %v727 = vmul.f32 %v725, %v53
  %v728 = vadd.f32 %v726, 1e-12
  %v729 = vadd.f32 %v727, 1e-12
  %v730 = vrsqrt.pop %v728
  %v731 = vmul.f32 %v730, %v728
  %v732 = vmul.f32 %v731, %v730
  %v733 = vmul.f32 0.5, %v732
  %v734 = vsub.f32 1.5, %v733
  %v735 = vmul.f32 %v730, %v734
  %vm736 = vweird.f32 %v728
  %vm737 = vweird.f32 %v730
  %vm738 = vmor %vm736, %vm737
  %v739 = vsel %vm738, %v730, %v735
  %v740 = vrsqrt.pop %v729
  %v741 = vmul.f32 %v740, %v729
  %v742 = vmul.f32 %v741, %v740
  %v743 = vmul.f32 0.5, %v742
  %v744 = vsub.f32 1.5, %v743
  %v745 = vmul.f32 %v740, %v744
  %vm746 = vweird.f32 %v729
  %vm747 = vweird.f32 %v740
  %vm748 = vmor %vm746, %vm747
  %v749 = vsel %vm748, %v740, %v745
  %v750 = vmul.f32 %v716, %v739
  %v751 = vmul.f32 %v717, %v749
  %v752 = vperm.slane %v34, 2
  %v753 = vmul.f32 %v750, %v752
  %v754 = vmul.f32 %v751, %v752
  %v755 = vperm.slane %v34, 3
  %v756 = vadd.f32 %v753, %v755
  %v757 = vadd.f32 %v754, %v755
  %s758 = scalar_lea.vmem %s3, 16
  %v759 = vld [vmem:[%s758] sm:$0xf]
  %v760 = vld [vmem:[%s758 + $0x4] sm:$0xf]
  %v761 = vld [vmem:[%s758 + $0x8] sm:$0xf]
  %v762 = vld [vmem:[%s758 + $0xc] sm:$0xf]
  %s763 = scalar_lea.vmem %s4, 16
  %v764 = vld [vmem:[%s763] sm:$0xf]
  %v765 = vld [vmem:[%s763 + $0x4] sm:$0xf]
  %v766 = vld [vmem:[%s763 + $0x8] sm:$0xf]
  %v767 = vld [vmem:[%s763 + $0xc] sm:$0xf]
  %s768 = scalar_lea.vmem %s5, 16
  %v769 = vld [vmem:[%s768] sm:$0xf]
  %v770 = vld [vmem:[%s768 + $0x4] sm:$0xf]
  %v771 = vld [vmem:[%s768 + $0x8] sm:$0xf]
  %v772 = vld [vmem:[%s768 + $0xc] sm:$0xf]
  %s773 = scalar_lea.vmem %s6, 32
  %v774 = vld [vmem:[%s773] sm:$0xf]
  %v775 = vld [vmem:[%s773 + $0x4] sm:$0xf]
  %v776 = vld [vmem:[%s773 + $0x8] sm:$0xf]
  %v777 = vld [vmem:[%s773 + $0xc] sm:$0xf]
  %v778 = vld [vmem:[%s773 + $0x10] sm:$0xf]
  %v779 = vld [vmem:[%s773 + $0x14] sm:$0xf]
  %v780 = vld [vmem:[%s773 + $0x18] sm:$0xf]
  %v781 = vld [vmem:[%s773 + $0x1c] sm:$0xf]
  %v782 = vpack.c.bf16 %v757, %v756
  %v783 = vperm.slane %v34, 4
  %v788 = vunpack.c.l.b16 %v759
  %v789 = vunpack.c.l.b16 %v760
  %v790 = vunpack.c.l.b16 %v761
  %v791 = vunpack.c.l.b16 %v762
  %v792 = vpack.c.b16 %v789, %v788
  %v793 = vpack.c.b16 %v791, %v790
  %v797 = vsel %vm40, %v782, 0
  %799 = vmatpush.bf16.msra.mxu0 0
  %800 = vmatpush.bf16.msra.mxu0 0
  %801 = vmatpush.bf16.msra.mxu0 0
  %802 = vmatpush.bf16.msra.mxu0 0
  %803 = vmatpush.bf16.msra.mxu0 0
  %804 = vmatpush.bf16.msra.mxu0 0
  %805 = vmatpush.bf16.msra.mxu0 %v793
  %806 = vmatpush.bf16.msra.mxu0 %v792
  %807 = vmatmul.bf16.gmra.mxu0 %v797
  %v808 = vpop.f32.mrf.mxu0
  %v809 = vadd.f32 %v783, %v808
  %v810 = vpop.f32.mrf.mxu0
  %v811 = vadd.f32 %v783, %v810
  %812 = vdwg.mxu0
  %815 = vrot.lane.b32.xlu0 %v809, 120
  %v816 = vpop.permute.xlu0 %815
  %817 = vrot.lane.b32.xlu0 %v811, 120
  %v818 = vpop.permute.xlu0 %817
  %821 = vrot.lane.b32.xlu0 %v809, 112
  %v822 = vpop.permute.xlu0 %821
  %823 = vrot.lane.b32.xlu0 %v811, 112
  %v824 = vpop.permute.xlu0 %823
  %827 = vrot.lane.b32.xlu0 %v809, 104
  %v828 = vpop.permute.xlu0 %827
  %829 = vrot.lane.b32.xlu0 %v811, 104
  %v830 = vpop.permute.xlu0 %829
  %v833 = vpack.c.bf16 %v809, %v809
  %v834 = vpack.c.bf16 %v811, %v811
  %v835 = vpack.c.bf16 %v816, %v816
  %v836 = vpack.c.bf16 %v818, %v818
  %v837 = vpack.c.bf16 %v822, %v822
  %v838 = vpack.c.bf16 %v824, %v824
  %v839 = vpack.c.bf16 %v828, %v828
  %v840 = vpack.c.bf16 %v830, %v830
  %v843 = vunpack.c.l.b16 %v833
  %v844 = vunpack.c.l.b16 %v834
  %v845 = vpack.c.b16 %v844, %v843
  %846 = vrot.lane.b32.xlu0 %v845, 96
  %v847 = vpop.permute.xlu0 %846
  %v849 = vsel %vm184, %v845, 0
  %v852 = vsel %vm184, %v847, 0
  %854 = vmatpush.bf16.xpose.msra.mxu0 0
  %855 = vmatpush.bf16.xpose.msra.mxu0 0
  %856 = vmatpush.bf16.xpose.msra.mxu0 0
  %857 = vmatpush.bf16.xpose.msra.mxu0 0
  %858 = vmatpush.bf16.xpose.msra.mxu0 0
  %859 = vmatpush.bf16.xpose.msra.mxu0 0
  %860 = vmatpush.bf16.xpose.msra.mxu0 0
  %861 = vmatpush.bf16.xpose.msra.mxu0 %v852
  %862 = vmatmul.bf16.gmra.mxu0 %v849
  %v863 = vpop.f32.mrf.mxu0
  %v864 = vadd.f32 0.0, %v863
  %v865 = vpop.f32.mrf.mxu0
  %v866 = vadd.f32 0.0, %v865
  %867 = vdwg.mxu0
  %v870 = vunpack.c.l.b16 %v835
  %v871 = vunpack.c.l.b16 %v836
  %v872 = vpack.c.b16 %v871, %v870
  %873 = vrot.lane.b32.xlu0 %v872, 96
  %v874 = vpop.permute.xlu0 %873
  %v876 = vsel %vm184, %v872, 0
  %v879 = vsel %vm184, %v874, 0
  %881 = vmatpush.bf16.xpose.msra.mxu0 0
  %882 = vmatpush.bf16.xpose.msra.mxu0 0
  %883 = vmatpush.bf16.xpose.msra.mxu0 0
  %884 = vmatpush.bf16.xpose.msra.mxu0 0
  %885 = vmatpush.bf16.xpose.msra.mxu0 0
  %886 = vmatpush.bf16.xpose.msra.mxu0 0
  %887 = vmatpush.bf16.xpose.msra.mxu0 0
  %888 = vmatpush.bf16.xpose.msra.mxu0 %v879
  %889 = vmatmul.bf16.gmra.mxu0 %v876
  %v890 = vpop.f32.mrf.mxu0
  %v891 = vadd.f32 0.0, %v890
  %v892 = vpop.f32.mrf.mxu0
  %v893 = vadd.f32 0.0, %v892
  %894 = vdwg.mxu0
  %v897 = vunpack.c.l.b16 %v837
  %v898 = vunpack.c.l.b16 %v838
  %v899 = vpack.c.b16 %v898, %v897
  %900 = vrot.lane.b32.xlu0 %v899, 96
  %v901 = vpop.permute.xlu0 %900
  %v903 = vsel %vm184, %v899, 0
  %v906 = vsel %vm184, %v901, 0
  %908 = vmatpush.bf16.xpose.msra.mxu0 0
  %909 = vmatpush.bf16.xpose.msra.mxu0 0
  %910 = vmatpush.bf16.xpose.msra.mxu0 0
  %911 = vmatpush.bf16.xpose.msra.mxu0 0
  %912 = vmatpush.bf16.xpose.msra.mxu0 0
  %913 = vmatpush.bf16.xpose.msra.mxu0 0
  %914 = vmatpush.bf16.xpose.msra.mxu0 0
  %915 = vmatpush.bf16.xpose.msra.mxu0 %v906
  %916 = vmatmul.bf16.gmra.mxu0 %v903
  %v917 = vpop.f32.mrf.mxu0
  %v918 = vadd.f32 0.0, %v917
  %v919 = vpop.f32.mrf.mxu0
  %v920 = vadd.f32 0.0, %v919
  %921 = vdwg.mxu0
  %v924 = vunpack.c.l.b16 %v839
  %v925 = vunpack.c.l.b16 %v840
  %v926 = vpack.c.b16 %v925, %v924
  %927 = vrot.lane.b32.xlu0 %v926, 96
  %v928 = vpop.permute.xlu0 %927
  %v930 = vsel %vm184, %v926, 0
  %v933 = vsel %vm184, %v928, 0
  %935 = vmatpush.bf16.xpose.msra.mxu0 0
  %936 = vmatpush.bf16.xpose.msra.mxu0 0
  %937 = vmatpush.bf16.xpose.msra.mxu0 0
  %938 = vmatpush.bf16.xpose.msra.mxu0 0
  %939 = vmatpush.bf16.xpose.msra.mxu0 0
  %940 = vmatpush.bf16.xpose.msra.mxu0 0
  %941 = vmatpush.bf16.xpose.msra.mxu0 0
  %942 = vmatpush.bf16.xpose.msra.mxu0 %v933
  %943 = vmatmul.bf16.gmra.mxu0 %v930
  %v944 = vpop.f32.mrf.mxu0
  %v945 = vadd.f32 0.0, %v944
  %v946 = vpop.f32.mrf.mxu0
  %v947 = vadd.f32 0.0, %v946
  %948 = vdwg.mxu0
  %v949 = vmul.f32 %v864, 0.35355338
  %v950 = vmul.f32 %v866, 0.35355338
  %v951 = vmul.f32 %v891, 0.35355338
  %v952 = vmul.f32 %v893, 0.35355338
  %v953 = vmul.f32 %v918, 0.35355338
  %v954 = vmul.f32 %v920, 0.35355338
  %v955 = vmul.f32 %v945, 0.35355338
  %v956 = vmul.f32 %v947, 0.35355338
  %v957 = vadd.f32 %v949, %v36
  %v958 = vadd.f32 %v950, %v37
  %v959 = vadd.f32 %v951, %v36
  %v960 = vadd.f32 %v952, %v37
  %v961 = vadd.f32 %v953, %v36
  %v962 = vadd.f32 %v954, %v37
  %v963 = vadd.f32 %v955, %v36
  %v964 = vadd.f32 %v956, %v37
  %v965 = vsel %vm302, %v957, -inf
  %966 = vmax.xlane.f32.xlu0 %v965
  %v967 = vpop.xlane.xlu0 %966
  %v968 = vsel %vm302, %v958, -inf
  %969 = vmax.xlane.f32.xlu0 %v968
  %v970 = vpop.xlane.xlu0 %969
  %v971 = vsel %vm302, %v959, -inf
  %972 = vmax.xlane.f32.xlu0 %v971
  %v973 = vpop.xlane.xlu0 %972
  %v974 = vsel %vm302, %v960, -inf
  %975 = vmax.xlane.f32.xlu0 %v974
  %v976 = vpop.xlane.xlu0 %975
  %v977 = vsel %vm302, %v961, -inf
  %978 = vmax.xlane.f32.xlu0 %v977
  %v979 = vpop.xlane.xlu0 %978
  %v980 = vsel %vm302, %v962, -inf
  %981 = vmax.xlane.f32.xlu0 %v980
  %v982 = vpop.xlane.xlu0 %981
  %v983 = vsel %vm302, %v963, -inf
  %984 = vmax.xlane.f32.xlu0 %v983
  %v985 = vpop.xlane.xlu0 %984
  %v986 = vsel %vm302, %v964, -inf
  %987 = vmax.xlane.f32.xlu0 %v986
  %v988 = vpop.xlane.xlu0 %987
  %v989 = vsub.f32 %v957, %v967
  %v990 = vsub.f32 %v958, %v970
  %v991 = vsub.f32 %v959, %v973
  %v992 = vsub.f32 %v960, %v976
  %v993 = vsub.f32 %v961, %v979
  %v994 = vsub.f32 %v962, %v982
  %v995 = vsub.f32 %v963, %v985
  %v996 = vsub.f32 %v964, %v988
  %v997 = vmul.f32 %v989, 1.442695
  %v998 = vpow.pop %v997
  %v999 = vmul.f32 %v990, 1.442695
  %v1000 = vpow.pop %v999
  %v1001 = vmul.f32 %v991, 1.442695
  %v1002 = vpow.pop %v1001
  %v1003 = vmul.f32 %v992, 1.442695
  %v1004 = vpow.pop %v1003
  %v1005 = vmul.f32 %v993, 1.442695
  %v1006 = vpow.pop %v1005
  %v1007 = vmul.f32 %v994, 1.442695
  %v1008 = vpow.pop %v1007
  %v1009 = vmul.f32 %v995, 1.442695
  %v1010 = vpow.pop %v1009
  %v1011 = vmul.f32 %v996, 1.442695
  %v1012 = vpow.pop %v1011
  %v1013 = vsel %vm302, %v998, 0.0
  %1014 = vadd.xlane.f32.xlu0 %v1013
  %v1015 = vpop.xlane.xlu0 %1014
  %v1016 = vsel %vm302, %v1000, 0.0
  %1017 = vadd.xlane.f32.xlu0 %v1016
  %v1018 = vpop.xlane.xlu0 %1017
  %v1019 = vsel %vm302, %v1002, 0.0
  %1020 = vadd.xlane.f32.xlu0 %v1019
  %v1021 = vpop.xlane.xlu0 %1020
  %v1022 = vsel %vm302, %v1004, 0.0
  %1023 = vadd.xlane.f32.xlu0 %v1022
  %v1024 = vpop.xlane.xlu0 %1023
  %v1025 = vsel %vm302, %v1006, 0.0
  %1026 = vadd.xlane.f32.xlu0 %v1025
  %v1027 = vpop.xlane.xlu0 %1026
  %v1028 = vsel %vm302, %v1008, 0.0
  %1029 = vadd.xlane.f32.xlu0 %v1028
  %v1030 = vpop.xlane.xlu0 %1029
  %v1031 = vsel %vm302, %v1010, 0.0
  %1032 = vadd.xlane.f32.xlu0 %v1031
  %v1033 = vpop.xlane.xlu0 %1032
  %v1034 = vsel %vm302, %v1012, 0.0
  %1035 = vadd.xlane.f32.xlu0 %v1034
  %v1036 = vpop.xlane.xlu0 %1035
  %v1037 = vrcp.pop %v1015
  %v1038 = vrcp.pop %v1018
  %v1039 = vrcp.pop %v1021
  %v1040 = vrcp.pop %v1024
  %v1041 = vrcp.pop %v1027
  %v1042 = vrcp.pop %v1030
  %v1043 = vrcp.pop %v1033
  %v1044 = vrcp.pop %v1036
  %v1045 = vmul.f32 %v998, %v1037
  %v1046 = vmul.f32 %v1000, %v1038
  %v1047 = vmul.f32 %v1002, %v1039
  %v1048 = vmul.f32 %v1004, %v1040
  %v1049 = vmul.f32 %v1006, %v1041
  %v1050 = vmul.f32 %v1008, %v1042
  %v1051 = vmul.f32 %v1010, %v1043
  %v1052 = vmul.f32 %v1012, %v1044
  %v1053 = vpack.c.bf16 %v1045, %v1045
  %v1054 = vpack.c.bf16 %v1046, %v1046
  %v1055 = vpack.c.bf16 %v1047, %v1047
  %v1056 = vpack.c.bf16 %v1048, %v1048
  %v1057 = vpack.c.bf16 %v1049, %v1049
  %v1058 = vpack.c.bf16 %v1050, %v1050
  %v1059 = vpack.c.bf16 %v1051, %v1051
  %v1060 = vpack.c.bf16 %v1052, %v1052
  %v1063 = vunpack.c.l.b16 %v1053
  %v1064 = vunpack.c.l.b16 %v1054
  %v1065 = vpack.c.b16 %v1064, %v1063
  %1066 = vrot.lane.b32.xlu0 %v845, 64
  %v1067 = vpop.permute.xlu0 %1066
  %v1070 = vsel %vm302, %v1065, 0
  %1072 = vmatpush.bf16.msra.mxu0 0
  %1073 = vmatpush.bf16.msra.mxu0 0
  %1074 = vmatpush.bf16.msra.mxu0 0
  %1075 = vmatpush.bf16.msra.mxu0 0
  %1076 = vmatpush.bf16.msra.mxu0 0
  %1077 = vmatpush.bf16.msra.mxu0 0
  %1078 = vmatpush.bf16.msra.mxu0 0
  %1079 = vmatpush.bf16.msra.mxu0 %v1067
  %1080 = vmatmul.bf16.gmra.mxu0 %v1070
  %v1081 = vpop.f32.mrf.mxu0
  %v1082 = vadd.f32 0.0, %v1081
  %v1083 = vpop.f32.mrf.mxu0
  %v1084 = vadd.f32 0.0, %v1083
  %1085 = vdwg.mxu0
  %v1088 = vunpack.c.l.b16 %v1055
  %v1089 = vunpack.c.l.b16 %v1056
  %v1090 = vpack.c.b16 %v1089, %v1088
  %1091 = vrot.lane.b32.xlu0 %v872, 64
  %v1092 = vpop.permute.xlu0 %1091
  %v1095 = vsel %vm302, %v1090, 0
  %1097 = vmatpush.bf16.msra.mxu0 0
  %1098 = vmatpush.bf16.msra.mxu0 0
  %1099 = vmatpush.bf16.msra.mxu0 0
  %1100 = vmatpush.bf16.msra.mxu0 0
  %1101 = vmatpush.bf16.msra.mxu0 0
  %1102 = vmatpush.bf16.msra.mxu0 0
  %1103 = vmatpush.bf16.msra.mxu0 0
  %1104 = vmatpush.bf16.msra.mxu0 %v1092
  %1105 = vmatmul.bf16.gmra.mxu0 %v1095
  %v1106 = vpop.f32.mrf.mxu0
  %v1107 = vadd.f32 0.0, %v1106
  %v1108 = vpop.f32.mrf.mxu0
  %v1109 = vadd.f32 0.0, %v1108
  %1110 = vdwg.mxu0
  %v1113 = vunpack.c.l.b16 %v1057
  %v1114 = vunpack.c.l.b16 %v1058
  %v1115 = vpack.c.b16 %v1114, %v1113
  %1116 = vrot.lane.b32.xlu0 %v899, 64
  %v1117 = vpop.permute.xlu0 %1116
  %v1120 = vsel %vm302, %v1115, 0
  %1122 = vmatpush.bf16.msra.mxu0 0
  %1123 = vmatpush.bf16.msra.mxu0 0
  %1124 = vmatpush.bf16.msra.mxu0 0
  %1125 = vmatpush.bf16.msra.mxu0 0
  %1126 = vmatpush.bf16.msra.mxu0 0
  %1127 = vmatpush.bf16.msra.mxu0 0
  %1128 = vmatpush.bf16.msra.mxu0 0
  %1129 = vmatpush.bf16.msra.mxu0 %v1117
  %1130 = vmatmul.bf16.gmra.mxu0 %v1120
  %v1131 = vpop.f32.mrf.mxu0
  %v1132 = vadd.f32 0.0, %v1131
  %v1133 = vpop.f32.mrf.mxu0
  %v1134 = vadd.f32 0.0, %v1133
  %1135 = vdwg.mxu0
  %v1138 = vunpack.c.l.b16 %v1059
  %v1139 = vunpack.c.l.b16 %v1060
  %v1140 = vpack.c.b16 %v1139, %v1138
  %1141 = vrot.lane.b32.xlu0 %v926, 64
  %v1142 = vpop.permute.xlu0 %1141
  %v1145 = vsel %vm302, %v1140, 0
  %1147 = vmatpush.bf16.msra.mxu0 0
  %1148 = vmatpush.bf16.msra.mxu0 0
  %1149 = vmatpush.bf16.msra.mxu0 0
  %1150 = vmatpush.bf16.msra.mxu0 0
  %1151 = vmatpush.bf16.msra.mxu0 0
  %1152 = vmatpush.bf16.msra.mxu0 0
  %1153 = vmatpush.bf16.msra.mxu0 0
  %1154 = vmatpush.bf16.msra.mxu0 %v1142
  %1155 = vmatmul.bf16.gmra.mxu0 %v1145
  %v1156 = vpop.f32.mrf.mxu0
  %v1157 = vadd.f32 0.0, %v1156
  %v1158 = vpop.f32.mrf.mxu0
  %v1159 = vadd.f32 0.0, %v1158
  %1160 = vdwg.mxu0
  %1163 = vrot.lane.b32.xlu0 %v1107, 8
  %v1164 = vpop.permute.xlu0 %1163
  %1165 = vrot.lane.b32.xlu0 %v1109, 8
  %v1166 = vpop.permute.xlu0 %1165
  %1171 = vrot.lane.b32.xlu0 %v1132, 16
  %v1172 = vpop.permute.xlu0 %1171
  %1173 = vrot.lane.b32.xlu0 %v1134, 16
  %v1174 = vpop.permute.xlu0 %1173
  %1179 = vrot.lane.b32.xlu0 %v1157, 24
  %v1180 = vpop.permute.xlu0 %1179
  %1181 = vrot.lane.b32.xlu0 %v1159, 24
  %v1182 = vpop.permute.xlu0 %1181
  %v1185 = vsel %vm184, %v1082, %v1164
  %v1186 = vsel %vm184, %v1084, %v1166
  %v1187 = vsel %vm302, %v1185, %v1172
  %v1188 = vsel %vm302, %v1186, %v1174
  %v1189 = vsel %vm527, %v1187, %v1180
  %v1190 = vsel %vm527, %v1188, %v1182
  %v1191 = vpack.c.bf16 %v1190, %v1189
  %v1192 = vperm.slane %v34, 5
  %v1197 = vunpack.c.l.b16 %v764
  %v1198 = vunpack.c.l.b16 %v765
  %v1199 = vunpack.c.l.b16 %v766
  %v1200 = vunpack.c.l.b16 %v767
  %v1201 = vpack.c.b16 %v1198, %v1197
  %v1202 = vpack.c.b16 %v1200, %v1199
  %v1206 = vsel %vm40, %v1191, 0
  %1208 = vmatpush.bf16.msra.mxu0 0
  %1209 = vmatpush.bf16.msra.mxu0 0
  %1210 = vmatpush.bf16.msra.mxu0 0
  %1211 = vmatpush.bf16.msra.mxu0 0
  %1212 = vmatpush.bf16.msra.mxu0 0
  %1213 = vmatpush.bf16.msra.mxu0 0
  %1214 = vmatpush.bf16.msra.mxu0 %v1202
  %1215 = vmatpush.bf16.msra.mxu0 %v1201
  %1216 = vmatmul.bf16.gmra.mxu0 %v1206
  %v1217 = vpop.f32.mrf.mxu0
  %v1218 = vadd.f32 %v1192, %v1217
  %v1219 = vpop.f32.mrf.mxu0
  %v1220 = vadd.f32 %v1192, %v1219
  %1221 = vdwg.mxu0
  %v1222 = vadd.f32 %v1218, %v756
  %v1223 = vadd.f32 %v1220, %v757
  %v1224 = vsel %vm40, %v1222, 0.0
  %1225 = vadd.xlane.f32.xlu0 %v1224
  %v1226 = vpop.xlane.xlu0 %1225
  %v1227 = vsel %vm40, %v1223, 0.0
  %1228 = vadd.xlane.f32.xlu0 %v1227
  %v1229 = vpop.xlane.xlu0 %1228
  %v1230 = vmul.f32 %v1226, %v53
  %v1231 = vmul.f32 %v1229, %v53
  %v1232 = vsub.f32 %v1222, %v1230
  %v1233 = vsub.f32 %v1223, %v1231
  %v1234 = vmul.f32 %v1232, %v1232
  %v1235 = vmul.f32 %v1233, %v1233
  %v1236 = vsel %vm40, %v1234, 0.0
  %1237 = vadd.xlane.f32.xlu0 %v1236
  %v1238 = vpop.xlane.xlu0 %1237
  %v1239 = vsel %vm40, %v1235, 0.0
  %1240 = vadd.xlane.f32.xlu0 %v1239
  %v1241 = vpop.xlane.xlu0 %1240
  %v1242 = vmul.f32 %v1238, %v53
  %v1243 = vmul.f32 %v1241, %v53
  %v1244 = vadd.f32 %v1242, 1e-12
  %v1245 = vadd.f32 %v1243, 1e-12
  %v1246 = vrsqrt.pop %v1244
  %v1247 = vmul.f32 %v1246, %v1244
  %v1248 = vmul.f32 %v1247, %v1246
  %v1249 = vmul.f32 0.5, %v1248
  %v1250 = vsub.f32 1.5, %v1249
  %v1251 = vmul.f32 %v1246, %v1250
  %vm1252 = vweird.f32 %v1244
  %vm1253 = vweird.f32 %v1246
  %vm1254 = vmor %vm1252, %vm1253
  %v1255 = vsel %vm1254, %v1246, %v1251
  %v1256 = vrsqrt.pop %v1245
  %v1257 = vmul.f32 %v1256, %v1245
  %v1258 = vmul.f32 %v1257, %v1256
  %v1259 = vmul.f32 0.5, %v1258
  %v1260 = vsub.f32 1.5, %v1259
  %v1261 = vmul.f32 %v1256, %v1260
  %vm1262 = vweird.f32 %v1245
  %vm1263 = vweird.f32 %v1256
  %vm1264 = vmor %vm1262, %vm1263
  %v1265 = vsel %vm1264, %v1256, %v1261
  %v1266 = vmul.f32 %v1232, %v1255
  %v1267 = vmul.f32 %v1233, %v1265
  %v1268 = vperm.slane %v34, 6
  %v1269 = vmul.f32 %v1266, %v1268
  %v1270 = vmul.f32 %v1267, %v1268
  %v1271 = vperm.slane %v34, 7
  %v1272 = vadd.f32 %v1269, %v1271
  %v1273 = vadd.f32 %v1270, %v1271
  %v1274 = vpack.c.bf16 %v1273, %v1272
  %v1275 = vperm.slane %v35, 0
  %v1280 = vunpack.c.l.b16 %v769
  %v1281 = vunpack.c.l.b16 %v770
  %v1282 = vunpack.c.l.b16 %v771
  %v1283 = vunpack.c.l.b16 %v772
  %v1284 = vpack.c.b16 %v1281, %v1280
  %v1285 = vpack.c.b16 %v1283, %v1282
  %v1289 = vsel %vm40, %v1274, 0
  %1291 = vmatpush.bf16.msra.mxu0 0
  %1292 = vmatpush.bf16.msra.mxu0 0
  %1293 = vmatpush.bf16.msra.mxu0 0
  %1294 = vmatpush.bf16.msra.mxu0 0
  %1295 = vmatpush.bf16.msra.mxu0 0
  %1296 = vmatpush.bf16.msra.mxu0 0
  %1297 = vmatpush.bf16.msra.mxu0 %v1285
  %1298 = vmatpush.bf16.msra.mxu0 %v1284
  %1299 = vmatmul.bf16.gmra.mxu0 %v1289
  %v1300 = vpop.f32.mrf.mxu0
  %v1301 = vadd.f32 %v1275, %v1300
  %v1302 = vpop.f32.mrf.mxu0
  %v1303 = vadd.f32 %v1275, %v1302
  %1304 = vdwg.mxu0
  %v1305 = vmul.f32 %v1301, 0.5
  %v1306 = vmul.f32 %v1303, 0.5
  %v1307 = vmul.f32 %v1301, 0.044715
  %v1308 = vmul.f32 %v1303, 0.044715
  %v1309 = vmul.f32 %v1307, %v1301
  %v1310 = vmul.f32 %v1308, %v1303
  %v1311 = vmul.f32 %v1309, %v1301
  %v1312 = vmul.f32 %v1310, %v1303
  %v1313 = vadd.f32 %v1301, %v1311
  %v1314 = vadd.f32 %v1303, %v1312
  %v1315 = vmul.f32 %v1313, 0.7978846
  %v1316 = vmul.f32 %v1314, 0.7978846
  %v1317 = vtanh.pop %v1315
  %v1318 = vtanh.pop %v1316
  %v1319 = vadd.f32 %v1317, 1.0
  %v1320 = vadd.f32 %v1318, 1.0
  %v1321 = vmul.f32 %v1305, %v1319
  %v1322 = vmul.f32 %v1306, %v1320
  %v1323 = vpack.c.bf16 %v1322, %v1321
  %v1324 = vperm.slane %v35, 1
  %v1333 = vunpack.c.l.b16 %v774
  %v1334 = vunpack.c.l.b16 %v775
  %v1335 = vunpack.c.l.b16 %v776
  %v1336 = vunpack.c.l.b16 %v777
  %v1337 = vunpack.c.l.b16 %v778
  %v1338 = vunpack.c.l.b16 %v779
  %v1339 = vunpack.c.l.b16 %v780
  %v1340 = vunpack.c.l.b16 %v781
  %v1341 = vpack.c.b16 %v1334, %v1333
  %v1342 = vpack.c.b16 %v1336, %v1335
  %v1343 = vpack.c.b16 %v1338, %v1337
  %v1344 = vpack.c.b16 %v1340, %v1339
  %v1350 = vsel %vm688, %v1323, 0
  %1352 = vmatpush.bf16.msra.mxu0 0
  %1353 = vmatpush.bf16.msra.mxu0 0
  %1354 = vmatpush.bf16.msra.mxu0 0
  %1355 = vmatpush.bf16.msra.mxu0 0
  %1356 = vmatpush.bf16.msra.mxu0 %v1344
  %1357 = vmatpush.bf16.msra.mxu0 %v1343
  %1358 = vmatpush.bf16.msra.mxu0 %v1342
  %1359 = vmatpush.bf16.msra.mxu0 %v1341
  %1360 = vmatmul.bf16.gmra.mxu0 %v1350
  %v1361 = vpop.f32.mrf.mxu0
  %v1362 = vadd.f32 %v1324, %v1361
  %v1363 = vpop.f32.mrf.mxu0
  %v1364 = vadd.f32 %v1324, %v1363
  %1365 = vdwg.mxu0
  %v1366 = vadd.f32 %v1362, %v1272
  %v1367 = vadd.f32 %v1364, %v1273
  %v1368 = vsel %vm40, %v1366, 0.0
  %1369 = vadd.xlane.f32.xlu0 %v1368
  %v1370 = vpop.xlane.xlu0 %1369
  %v1371 = vsel %vm40, %v1367, 0.0
  %1372 = vadd.xlane.f32.xlu0 %v1371
  %v1373 = vpop.xlane.xlu0 %1372
  %v1374 = vmul.f32 %v1370, %v53
  %v1375 = vmul.f32 %v1373, %v53
  %v1376 = vsub.f32 %v1366, %v1374
  %v1377 = vsub.f32 %v1367, %v1375
  %v1378 = vmul.f32 %v1376, %v1376
  %v1379 = vmul.f32 %v1377, %v1377
  %v1380 = vsel %vm40, %v1378, 0.0
  %1381 = vadd.xlane.f32.xlu0 %v1380
  %v1382 = vpop.xlane.xlu0 %1381
  %v1383 = vsel %vm40, %v1379, 0.0
  %1384 = vadd.xlane.f32.xlu0 %v1383
  %v1385 = vpop.xlane.xlu0 %1384
  %v1386 = vmul.f32 %v1382, %v53
  %v1387 = vmul.f32 %v1385, %v53
  %v1388 = vadd.f32 %v1386, 1e-12
  %v1389 = vadd.f32 %v1387, 1e-12
  %v1390 = vrsqrt.pop %v1388
  %v1391 = vmul.f32 %v1390, %v1388
  %v1392 = vmul.f32 %v1391, %v1390
  %v1393 = vmul.f32 0.5, %v1392
  %v1394 = vsub.f32 1.5, %v1393
  %v1395 = vmul.f32 %v1390, %v1394
  %vm1396 = vweird.f32 %v1388
  %vm1397 = vweird.f32 %v1390
  %vm1398 = vmor %vm1396, %vm1397
  %v1399 = vsel %vm1398, %v1390, %v1395
  %v1400 = vrsqrt.pop %v1389
  %v1401 = vmul.f32 %v1400, %v1389
  %v1402 = vmul.f32 %v1401, %v1400
  %v1403 = vmul.f32 0.5, %v1402
  %v1404 = vsub.f32 1.5, %v1403
  %v1405 = vmul.f32 %v1400, %v1404
  %vm1406 = vweird.f32 %v1389
  %vm1407 = vweird.f32 %v1400
  %vm1408 = vmor %vm1406, %vm1407
  %v1409 = vsel %vm1408, %v1400, %v1405
  %v1410 = vmul.f32 %v1376, %v1399
  %v1411 = vmul.f32 %v1377, %v1409
  %v1412 = vperm.slane %v35, 2
  %v1413 = vmul.f32 %v1410, %v1412
  %v1414 = vmul.f32 %v1411, %v1412
  %v1415 = vperm.slane %v35, 3
  %v1416 = vadd.f32 %v1413, %v1415
  %v1417 = vadd.f32 %v1414, %v1415
  %v1418 = vpack.c.bf16 %v1417, %v1416
  %v1419 = vld [vmem:[%s7] sm:$0xf]
  %v1420 = vld [vmem:[%s7 + $0x4] sm:$0xf]
  %v1421 = vld [vmem:[%s7 + $0x8] sm:$0xf]
  %v1422 = vld [vmem:[%s7 + $0xc] sm:$0xf]
  %v1423 = vperm.slane %v33, 2
  %v1428 = vunpack.c.l.b16 %v1419
  %v1429 = vunpack.c.l.b16 %v1420
  %v1430 = vunpack.c.l.b16 %v1421
  %v1431 = vunpack.c.l.b16 %v1422
  %v1432 = vpack.c.b16 %v1429, %v1428
  %v1433 = vpack.c.b16 %v1431, %v1430
  %v1437 = vsel %vm40, %v1418, 0
  %1439 = vmatpush.bf16.msra.mxu0 0
  %1440 = vmatpush.bf16.msra.mxu0 0
  %1441 = vmatpush.bf16.msra.mxu0 0
  %1442 = vmatpush.bf16.msra.mxu0 0
  %1443 = vmatpush.bf16.msra.mxu0 0
  %1444 = vmatpush.bf16.msra.mxu0 0
  %1445 = vmatpush.bf16.msra.mxu0 %v1433
  %1446 = vmatpush.bf16.msra.mxu0 %v1432
  %1447 = vmatmul.bf16.gmra.mxu0 %v1437
  %v1448 = vpop.f32.mrf.mxu0
  %v1449 = vadd.f32 %v1423, %v1448
  %v1450 = vpop.f32.mrf.mxu0
  %v1451 = vadd.f32 %v1423, %v1450
  %1452 = vdwg.mxu0
  %v1453 = vtanh.pop %v1449
  %v1454 = vtanh.pop %v1451
  %v1455 = vpack.c.bf16 %v1454, %v1453
  %v1456 = vld [vmem:[%s8] sm:$0xf]
  %v1457 = vld [vmem:[%s8 + $0x4] sm:$0xf]
  %v1458 = vld [vmem:[%s8 + $0x8] sm:$0xf]
  %v1459 = vld [vmem:[%s8 + $0xc] sm:$0xf]
  %v1460 = vperm.slane %v33, 3
  %v1465 = vunpack.c.l.b16 %v1456
  %v1466 = vunpack.c.l.b16 %v1457
  %v1467 = vunpack.c.l.b16 %v1458
  %v1468 = vunpack.c.l.b16 %v1459
  %v1469 = vpack.c.b16 %v1466, %v1465
  %v1470 = vpack.c.b16 %v1468, %v1467
  %v1474 = vsel %vm40, %v1455, 0
  %1476 = vmatpush.bf16.msra.mxu0 0
  %1477 = vmatpush.bf16.msra.mxu0 0
  %1478 = vmatpush.bf16.msra.mxu0 0
  %1479 = vmatpush.bf16.msra.mxu0 0
  %1480 = vmatpush.bf16.msra.mxu0 0
  %1481 = vmatpush.bf16.msra.mxu0 0
  %1482 = vmatpush.bf16.msra.mxu0 %v1470
  %1483 = vmatpush.bf16.msra.mxu0 %v1469
  %1484 = vmatmul.bf16.gmra.mxu0 %v1474
  %v1485 = vpop.f32.mrf.mxu0
  %v1486 = vadd.f32 %v1460, %v1485
  %v1487 = vpop.f32.mrf.mxu0
  %v1488 = vadd.f32 %v1460, %v1487
  %1489 = vdwg.mxu0
  %1490 = vst [vmem:[%s9] sm:$0xff] %v1486
  %1491 = vst [vmem:[%s9 + $0x8] sm:$0xff] %v1488
  // Predicated region
  $region38: #{san_bert_forward.1} parent=0 // pred_check
    _
  $region39: #{san_bert_forward.1} parent=0 // pred_check_branch
    %1493 = sbr.rel (0) target = $region41
  $region40: #{san_bert_forward.1} parent=0 // pred_region
    _
  $region41: #{san_bert_forward.1} parent=0 // pred_fallthru
    _
  // Predicated region
  $region42: #{san_bert_forward.1} parent=0 // pred_check
    _
  $region43: #{san_bert_forward.1} parent=0 // pred_check_branch
    %1495 = sbr.rel (0) target = $region45
  $region44: #{san_bert_forward.1} parent=0 // pred_region
    _
  $region45: #{san_bert_forward.1} parent=0 // pred_fallthru
    _

</llo_original>
